<compile_context>
chip_gen: v6e
topology: v6e:2x2x1
jax: 0.10.0
libtpu: 0.0.40
codegen_flags: <defaults>
</compile_context>

<pallas_src>
import functools
import math

import jax
import jax.numpy as jnp
from jax import lax
from jax.experimental import pallas as pl
from jax.experimental.pallas import tpu as pltpu

LANE = 128


def _round_up(x, m):
    return ((x + m - 1) // m) * m


def transformer_block_kernel(
    x_ref,        # (N, D)        N = S*B rows, ordered (s, b)
    bias_ref,     # (N, N)        0 same-batch / -1e30 cross-batch additive bias
    w_qkv_ref,    # (D, 3*H*HP)   fused QKV, each head zero-padded to HP lanes
    b_qkv_ref,    # (1, 3*H*HP)
    w_out_ref,    # (H*HP, D)     out_proj.weight.T, per-head rows padded to HP
    b_out_ref,    # (1, D)
    g1_ref, bt1_ref,    # (1, D)  LayerNorm1 gamma/beta
    w1_ref, b1_ref,     # (D, FP), (1, FP)  ffn[0], F zero-padded to FP lanes
    w2_ref, b2_ref,     # (FP, D), (1, D)   ffn[2]
    g2_ref, bt2_ref,    # (1, D)  LayerNorm2 gamma/beta
    o_ref,        # (N, D)
    *, num_heads):
    N, D = x_ref.shape
    H = num_heads
    HP = w_out_ref.shape[0] // H         # padded (lane-dense) per-head width
    Dh = D // H                          # true head dim
    scale = 1.0 / math.sqrt(Dh)

    x = x_ref[...]                       # (N, D) fp32
    attn_bias = bias_ref[...]            # (N, N) precomputed in the wrapper
    w_out_pad = w_out_ref[...]           # (H*HP, D)

    # --- fused QKV projection over all (seq, batch) rows at once ---
    qkv = (jnp.dot(x, w_qkv_ref[...], preferred_element_type=jnp.float32)
           + b_qkv_ref[...])             # (N, 3*H*HP); padded lanes are exactly 0

    # --- multi-head self-attention; per-head slices are 128-aligned,
    #     concat folded into the out-projection, no transposes anywhere ---
    contract_last = (((1,), (1,)), ((), ()))   # q_h . k_h^T without forming k_h.T
    attn = None
    for h in range(H):                   # static loop, H is small
        qo = h * HP
        ko = (H + h) * HP
        vo = (2 * H + h) * HP
        qh = qkv[:, qo:qo + HP]          # (N, HP) full-vreg slice
        kh = qkv[:, ko:ko + HP]
        vh = qkv[:, vo:vo + HP]
        s = lax.dot_general(qh, kh, contract_last,
                            preferred_element_type=jnp.float32) * scale + attn_bias
        s = s - jnp.max(s, axis=-1, keepdims=True)
        p = jnp.exp(s)
        p = p * pl.reciprocal(jnp.sum(p, axis=-1, keepdims=True), approx=True)
        ctx = jnp.dot(p, vh, preferred_element_type=jnp.float32)     # (N, HP)
        # concat(ctx_h) @ W_out.T == sum_h ctx_h @ W_out.T[rows of head h]
        part = jnp.dot(ctx, w_out_pad[qo:qo + HP, :],
                       preferred_element_type=jnp.float32)
        attn = part if attn is None else attn + part
    attn = attn + b_out_ref[...]

    def layer_norm(y, gamma, beta, eps=1e-5):
        mu = jnp.mean(y, axis=-1, keepdims=True)
        var = jnp.mean((y - mu) ** 2, axis=-1, keepdims=True)
        return (y - mu) * lax.rsqrt(var + eps) * gamma + beta

    # --- residual + norm1 (over the true D features; D is NOT padded) ---
    x1 = layer_norm(x + attn, g1_ref[...], bt1_ref[...])

    # --- FFN, hidden dim lane-dense (padded to FP=128; ReLU(0)=0 -> exact) ---
    h1 = jnp.dot(x1, w1_ref[...], preferred_element_type=jnp.float32) + b1_ref[...]
    h1 = jnp.maximum(h1, 0.0)
    ff = jnp.dot(h1, w2_ref[...], preferred_element_type=jnp.float32) + b2_ref[...]

    # --- residual + norm2 ---
    o_ref[...] = layer_norm(x1 + ff, g2_ref[...], bt2_ref[...])


def prepare_params(params, num_heads):
    """One-time re-layout of PyTorch-convention weights into lane-dense kernel
    layout: each head's Dh columns/rows get their own zero-padded 128-lane
    group, and the FFN hidden dim is zero-padded to a multiple of 128."""
    D = params["w_out"].shape[0]
    F = params["w1"].shape[0]
    H = num_heads
    Dh = D // H
    HP = _round_up(Dh, LANE)             # 8  -> 128
    FP = _round_up(F, LANE)              # 64 -> 128

    w_in = params["w_in"]                # (3D, D): [W_q; W_k; W_v]
    b_in = params["b_in"]                # (3D,)

    w_qkv = jnp.zeros((D, 3 * H * HP), jnp.float32)
    b_qkv = jnp.zeros((1, 3 * H * HP), jnp.float32)
    for t in range(3):                   # 0:Q 1:K 2:V
        w_t = w_in[t * D:(t + 1) * D, :].T     # (D, D), x @ w_t = projection
        b_t = b_in[t * D:(t + 1) * D]
        for h in range(H):
            c0 = (t * H + h) * HP
            w_qkv = w_qkv.at[:, c0:c0 + Dh].set(w_t[:, h * Dh:(h + 1) * Dh])
            b_qkv = b_qkv.at[0, c0:c0 + Dh].set(b_t[h * Dh:(h + 1) * Dh])

    w_out_t = params["w_out"].T          # (D, D)
    w_out_pad = jnp.zeros((H * HP, D), jnp.float32)
    for h in range(H):
        w_out_pad = w_out_pad.at[h * HP:h * HP + Dh, :].set(
            w_out_t[h * Dh:(h + 1) * Dh, :])

    w1_pad = jnp.zeros((D, FP), jnp.float32).at[:, :F].set(params["w1"].T)
    b1_pad = jnp.zeros((1, FP), jnp.float32).at[0, :F].set(params["b1"])
    w2_pad = jnp.zeros((FP, D), jnp.float32).at[:F, :].set(params["w2"].T)

    return (
        w_qkv, b_qkv,
        w_out_pad, params["b_out"][None, :],
        params["g1"][None, :], params["bt1"][None, :],
        w1_pad, b1_pad,
        w2_pad, params["b2"][None, :],
        params["g2"][None, :], params["bt2"][None, :],
    )


@functools.partial(jax.jit, static_argnums=2)
def transformer_block(x_sbd, prepped, num_heads):
    """x_sbd: (S, B, D) float32 (PyTorch layout). Returns (S, B, D)."""
    S, B, D = x_sbd.shape
    N = S * B
    x2d = x_sbd.reshape(N, D)            # contiguous reshape: free under jit

    # Block-diagonal additive bias keeping attention within each batch element
    # (row r is token (s = r // B, b = r % B)).  Built here once -> XLA
    # constant-folds it; 1 KiB extra DMA, no per-call VPU work in the kernel.
    row_b = lax.broadcasted_iota(jnp.int32, (N, N), 0) % B
    col_b = lax.broadcasted_iota(jnp.int32, (N, N), 1) % B
    attn_bias = jnp.where(row_b == col_b, jnp.float32(0.0), jnp.float32(-1e30))

    inputs = (x2d, attn_bias) + tuple(prepped)
    vmem = pl.BlockSpec(memory_space=pltpu.MemorySpace.VMEM)

    # TODO(synk): for realistic S*B add a "parallel" row-grid axis (constant
    #             index_maps for the weights) so v7x's second TensorCore is
    #             used; at N=16 a gridless single invocation is strictly better.
    out2d = pl.pallas_call(
        functools.partial(transformer_block_kernel, num_heads=num_heads),
        out_shape=jax.ShapeDtypeStruct((N, D), jnp.float32),
        in_specs=[vmem] * len(inputs),
        out_specs=vmem,
    )(*inputs)

    return out2d.reshape(S, B, D)


def reference_block(x_sbd, params, num_heads):
    """Pure-JAX reference matching PyTorch nn.MultiheadAttention semantics."""
    x = jnp.transpose(x_sbd, (1, 0, 2))  # (B, S, D)
    B, S, D = x.shape
    Dh = D // num_heads

    qkv = x @ params["w_in"].T + params["b_in"]  # (B, S, 3D)
    q, k, v = qkv[..., :D], qkv[..., D:2 * D], qkv[..., 2 * D:]

    def split(t):
        return t.reshape(B, S, num_heads, Dh).transpose(0, 2, 1, 3)  # (B,H,S,Dh)

    qh, kh, vh = split(q), split(k), split(v)
    s = jnp.einsum("bhqd,bhkd->bhqk", qh, kh) / jnp.sqrt(jnp.float32(Dh))
    p = jax.nn.softmax(s, axis=-1)
    ctx = jnp.einsum("bhqk,bhkd->bhqd", p, vh).transpose(0, 2, 1, 3).reshape(B, S, D)
    attn = ctx @ params["w_out"].T + params["b_out"]

    def ln(y, g, b, eps=1e-5):
        mu = y.mean(-1, keepdims=True)
        var = ((y - mu) ** 2).mean(-1, keepdims=True)
        return (y - mu) / jnp.sqrt(var + eps) * g + b

    x1 = ln(x + attn, params["g1"], params["bt1"])
    h1 = jax.nn.relu(x1 @ params["w1"].T + params["b1"])
    ff = h1 @ params["w2"].T + params["b2"]
    x2 = ln(x1 + ff, params["g2"], params["bt2"])
    return jnp.transpose(x2, (1, 0, 2))


def make_params(key, input_dim, num_heads, ff_hidden_dim):
    D, F = input_dim, ff_hidden_dim
    ks = jax.random.split(key, 8)
    scale = 0.05
    return {
        # nn.MultiheadAttention
        "w_in": scale * jax.random.normal(ks[0], (3 * D, D), jnp.float32),
        "b_in": scale * jax.random.normal(ks[1], (3 * D,), jnp.float32),
        "w_out": scale * jax.random.normal(ks[2], (D, D), jnp.float32),
        "b_out": scale * jax.random.normal(ks[3], (D,), jnp.float32),
        # ffn
        "w1": scale * jax.random.normal(ks[4], (F, D), jnp.float32),
        "b1": scale * jax.random.normal(ks[5], (F,), jnp.float32),
        "w2": scale * jax.random.normal(ks[6], (D, F), jnp.float32),
        "b2": scale * jax.random.normal(ks[7], (D,), jnp.float32),
        # layer norms (default init)
        "g1": jnp.ones((D,), jnp.float32),
        "bt1": jnp.zeros((D,), jnp.float32),
        "g2": jnp.ones((D,), jnp.float32),
        "bt2": jnp.zeros((D,), jnp.float32),
    }


if __name__ == "__main__":
    SEQ, BATCH, DIM = 8, 2, 32
    NUM_HEADS, FF_HIDDEN = 4, 64

    key = jax.random.PRNGKey(0)
    kx, kp = jax.random.split(key)
    x = jax.random.normal(kx, (SEQ, BATCH, DIM), jnp.float32)  # (S, B, D) PyTorch layout
    params = make_params(kp, DIM, NUM_HEADS, FF_HIDDEN)
    prepped = prepare_params(params, NUM_HEADS)   # one-time lane-dense re-layout

    out = transformer_block(x, prepped, NUM_HEADS)
    out = jax.block_until_ready(out)

    ref = jax.block_until_ready(reference_block(x, params, NUM_HEADS))
    assert out.shape == (SEQ, BATCH, DIM)
    # Tolerance 1e-3: the softmax denominator uses the EUP approximate
    # reciprocal (pl.reciprocal(approx=True)), trading a ~1e-3-class relative
    # error on the denominator for a free slot; everything else is exact fp32.
    err = float(jnp.max(jnp.abs(out - ref)))
    assert jnp.allclose(out, ref, atol=1e-3, rtol=1e-3), err

    print("KERNEL_OK")
</pallas_src>

<mosaic_0001>
module attributes {stable_mosaic.version = 11 : i64} {
  func.func @transformer_block_kernel(%arg0: memref<16x32xf32, #tpu.memory_space<vmem>>, %arg1: memref<16x16xf32, #tpu.memory_space<vmem>>, %arg2: memref<32x1536xf32, #tpu.memory_space<vmem>>, %arg3: memref<1x1536xf32, #tpu.memory_space<vmem>>, %arg4: memref<512x32xf32, #tpu.memory_space<vmem>>, %arg5: memref<1x32xf32, #tpu.memory_space<vmem>>, %arg6: memref<1x32xf32, #tpu.memory_space<vmem>>, %arg7: memref<1x32xf32, #tpu.memory_space<vmem>>, %arg8: memref<32x128xf32, #tpu.memory_space<vmem>>, %arg9: memref<1x128xf32, #tpu.memory_space<vmem>>, %arg10: memref<128x32xf32, #tpu.memory_space<vmem>>, %arg11: memref<1x32xf32, #tpu.memory_space<vmem>>, %arg12: memref<1x32xf32, #tpu.memory_space<vmem>>, %arg13: memref<1x32xf32, #tpu.memory_space<vmem>>, %arg14: memref<16x32xf32, #tpu.memory_space<vmem>>) attributes {dimension_semantics = [], scalar_prefetch = 0 : i64, scratch_operands = 0 : i64, tpu.core_type = #tpu.core_type<tc>} {
    %c0 = arith.constant 0 : index
    %c0_0 = arith.constant 0 : index
    %0 = vector.load %arg0[%c0, %c0_0] : memref<16x32xf32, #tpu.memory_space<vmem>>, vector<16x32xf32>
    %c0_1 = arith.constant 0 : index
    %c0_2 = arith.constant 0 : index
    %1 = vector.load %arg1[%c0_1, %c0_2] : memref<16x16xf32, #tpu.memory_space<vmem>>, vector<16x16xf32>
    %c0_3 = arith.constant 0 : index
    %c0_4 = arith.constant 0 : index
    %2 = vector.load %arg4[%c0_3, %c0_4] : memref<512x32xf32, #tpu.memory_space<vmem>>, vector<512x32xf32>
    %c0_5 = arith.constant 0 : index
    %c0_6 = arith.constant 0 : index
    %3 = vector.load %arg2[%c0_5, %c0_6] : memref<32x1536xf32, #tpu.memory_space<vmem>>, vector<32x1536xf32>
    %cst = arith.constant dense<0.000000e+00> : vector<16x1536xf32>
    %4 = tpu.matmul %0, %3, %cst {dimension_numbers = #tpu.dot_dimension_numbers<[1], [0], [0], [1], [0, 0, 1, 1], [], []>} : vector<16x32xf32>, vector<32x1536xf32>, vector<16x1536xf32> -> vector<16x1536xf32>
    %c0_7 = arith.constant 0 : index
    %c0_8 = arith.constant 0 : index
    %5 = vector.load %arg3[%c0_7, %c0_8] : memref<1x1536xf32, #tpu.memory_space<vmem>>, vector<1x1536xf32>
    %6 = vector.broadcast %5 : vector<1x1536xf32> to vector<16x1536xf32>
    %7 = arith.addf %4, %6 : vector<16x1536xf32>
    %8 = vector.extract_strided_slice %7 {offsets = [0, 0], sizes = [16, 128], strides = [1, 1]} : vector<16x1536xf32> to vector<16x128xf32>
    %9 = vector.extract_strided_slice %7 {offsets = [0, 512], sizes = [16, 128], strides = [1, 1]} : vector<16x1536xf32> to vector<16x128xf32>
    %10 = vector.extract_strided_slice %7 {offsets = [0, 1024], sizes = [16, 128], strides = [1, 1]} : vector<16x1536xf32> to vector<16x128xf32>
    %cst_9 = arith.constant dense<0.000000e+00> : vector<16x16xf32>
    %11 = tpu.matmul %8, %9, %cst_9 {dimension_numbers = #tpu.dot_dimension_numbers<[1], [1], [0], [0], [0, 0, 1, 0], [], []>} : vector<16x128xf32>, vector<16x128xf32>, vector<16x16xf32> -> vector<16x16xf32>
    %cst_10 = arith.constant 0.353553385 : f32
    %12 = vector.broadcast %cst_10 : f32 to vector<16x16xf32>
    %13 = arith.mulf %11, %12 : vector<16x16xf32>
    %14 = arith.addf %13, %1 : vector<16x16xf32>
    %cst_11 = arith.constant dense<0xFF800000> : vector<16xf32>
    %15 = vector.multi_reduction <maximumf>, %14, %cst_11 [1] : vector<16x16xf32> to vector<16xf32>
    %16 = vector.shape_cast %15 : vector<16xf32> to vector<16x1xf32>
    %17 = vector.broadcast %16 : vector<16x1xf32> to vector<16x16xf32>
    %18 = arith.subf %14, %17 : vector<16x16xf32>
    %19 = math.exp %18 : vector<16x16xf32>
    %cst_12 = arith.constant dense<0.000000e+00> : vector<16xf32>
    %20 = vector.multi_reduction <add>, %19, %cst_12 [1] : vector<16x16xf32> to vector<16xf32>
    %21 = vector.shape_cast %20 : vector<16xf32> to vector<16x1xf32>
    %22 = tpu.reciprocal %21 {approx = true} : vector<16x1xf32> -> vector<16x1xf32>
    %23 = vector.broadcast %22 : vector<16x1xf32> to vector<16x16xf32>
    %24 = arith.mulf %19, %23 : vector<16x16xf32>
    %cst_13 = arith.constant dense<0.000000e+00> : vector<16x128xf32>
    %25 = tpu.matmul %24, %10, %cst_13 {dimension_numbers = #tpu.dot_dimension_numbers<[1], [0], [0], [1], [0, 0, 1, 1], [], []>} : vector<16x16xf32>, vector<16x128xf32>, vector<16x128xf32> -> vector<16x128xf32>
    %26 = vector.extract_strided_slice %2 {offsets = [0, 0], sizes = [128, 32], strides = [1, 1]} : vector<512x32xf32> to vector<128x32xf32>
    %cst_14 = arith.constant dense<0.000000e+00> : vector<16x32xf32>
    %27 = tpu.matmul %25, %26, %cst_14 {dimension_numbers = #tpu.dot_dimension_numbers<[1], [0], [0], [1], [0, 0, 1, 1], [], []>} : vector<16x128xf32>, vector<128x32xf32>, vector<16x32xf32> -> vector<16x32xf32>
    %28 = vector.extract_strided_slice %7 {offsets = [0, 128], sizes = [16, 128], strides = [1, 1]} : vector<16x1536xf32> to vector<16x128xf32>
    %29 = vector.extract_strided_slice %7 {offsets = [0, 640], sizes = [16, 128], strides = [1, 1]} : vector<16x1536xf32> to vector<16x128xf32>
    %30 = vector.extract_strided_slice %7 {offsets = [0, 1152], sizes = [16, 128], strides = [1, 1]} : vector<16x1536xf32> to vector<16x128xf32>
    %cst_15 = arith.constant dense<0.000000e+00> : vector<16x16xf32>
    %31 = tpu.matmul %28, %29, %cst_15 {dimension_numbers = #tpu.dot_dimension_numbers<[1], [1], [0], [0], [0, 0, 1, 0], [], []>} : vector<16x128xf32>, vector<16x128xf32>, vector<16x16xf32> -> vector<16x16xf32>
    %cst_16 = arith.constant 0.353553385 : f32
    %32 = vector.broadcast %cst_16 : f32 to vector<16x16xf32>
    %33 = arith.mulf %31, %32 : vector<16x16xf32>
    %34 = arith.addf %33, %1 : vector<16x16xf32>
    %cst_17 = arith.constant dense<0xFF800000> : vector<16xf32>
    %35 = vector.multi_reduction <maximumf>, %34, %cst_17 [1] : vector<16x16xf32> to vector<16xf32>
    %36 = vector.shape_cast %35 : vector<16xf32> to vector<16x1xf32>
    %37 = vector.broadcast %36 : vector<16x1xf32> to vector<16x16xf32>
    %38 = arith.subf %34, %37 : vector<16x16xf32>
    %39 = math.exp %38 : vector<16x16xf32>
    %cst_18 = arith.constant dense<0.000000e+00> : vector<16xf32>
    %40 = vector.multi_reduction <add>, %39, %cst_18 [1] : vector<16x16xf32> to vector<16xf32>
    %41 = vector.shape_cast %40 : vector<16xf32> to vector<16x1xf32>
    %42 = tpu.reciprocal %41 {approx = true} : vector<16x1xf32> -> vector<16x1xf32>
    %43 = vector.broadcast %42 : vector<16x1xf32> to vector<16x16xf32>
    %44 = arith.mulf %39, %43 : vector<16x16xf32>
    %cst_19 = arith.constant dense<0.000000e+00> : vector<16x128xf32>
    %45 = tpu.matmul %44, %30, %cst_19 {dimension_numbers = #tpu.dot_dimension_numbers<[1], [0], [0], [1], [0, 0, 1, 1], [], []>} : vector<16x16xf32>, vector<16x128xf32>, vector<16x128xf32> -> vector<16x128xf32>
    %46 = vector.extract_strided_slice %2 {offsets = [128, 0], sizes = [128, 32], strides = [1, 1]} : vector<512x32xf32> to vector<128x32xf32>
    %cst_20 = arith.constant dense<0.000000e+00> : vector<16x32xf32>
    %47 = tpu.matmul %45, %46, %cst_20 {dimension_numbers = #tpu.dot_dimension_numbers<[1], [0], [0], [1], [0, 0, 1, 1], [], []>} : vector<16x128xf32>, vector<128x32xf32>, vector<16x32xf32> -> vector<16x32xf32>
    %48 = arith.addf %27, %47 : vector<16x32xf32>
    %49 = vector.extract_strided_slice %7 {offsets = [0, 256], sizes = [16, 128], strides = [1, 1]} : vector<16x1536xf32> to vector<16x128xf32>
    %50 = vector.extract_strided_slice %7 {offsets = [0, 768], sizes = [16, 128], strides = [1, 1]} : vector<16x1536xf32> to vector<16x128xf32>
    %51 = vector.extract_strided_slice %7 {offsets = [0, 1280], sizes = [16, 128], strides = [1, 1]} : vector<16x1536xf32> to vector<16x128xf32>
    %cst_21 = arith.constant dense<0.000000e+00> : vector<16x16xf32>
    %52 = tpu.matmul %49, %50, %cst_21 {dimension_numbers = #tpu.dot_dimension_numbers<[1], [1], [0], [0], [0, 0, 1, 0], [], []>} : vector<16x128xf32>, vector<16x128xf32>, vector<16x16xf32> -> vector<16x16xf32>
    %cst_22 = arith.constant 0.353553385 : f32
    %53 = vector.broadcast %cst_22 : f32 to vector<16x16xf32>
    %54 = arith.mulf %52, %53 : vector<16x16xf32>
    %55 = arith.addf %54, %1 : vector<16x16xf32>
    %cst_23 = arith.constant dense<0xFF800000> : vector<16xf32>
    %56 = vector.multi_reduction <maximumf>, %55, %cst_23 [1] : vector<16x16xf32> to vector<16xf32>
    %57 = vector.shape_cast %56 : vector<16xf32> to vector<16x1xf32>
    %58 = vector.broadcast %57 : vector<16x1xf32> to vector<16x16xf32>
    %59 = arith.subf %55, %58 : vector<16x16xf32>
    %60 = math.exp %59 : vector<16x16xf32>
    %cst_24 = arith.constant dense<0.000000e+00> : vector<16xf32>
    %61 = vector.multi_reduction <add>, %60, %cst_24 [1] : vector<16x16xf32> to vector<16xf32>
    %62 = vector.shape_cast %61 : vector<16xf32> to vector<16x1xf32>
    %63 = tpu.reciprocal %62 {approx = true} : vector<16x1xf32> -> vector<16x1xf32>
    %64 = vector.broadcast %63 : vector<16x1xf32> to vector<16x16xf32>
    %65 = arith.mulf %60, %64 : vector<16x16xf32>
    %cst_25 = arith.constant dense<0.000000e+00> : vector<16x128xf32>
    %66 = tpu.matmul %65, %51, %cst_25 {dimension_numbers = #tpu.dot_dimension_numbers<[1], [0], [0], [1], [0, 0, 1, 1], [], []>} : vector<16x16xf32>, vector<16x128xf32>, vector<16x128xf32> -> vector<16x128xf32>
    %67 = vector.extract_strided_slice %2 {offsets = [256, 0], sizes = [128, 32], strides = [1, 1]} : vector<512x32xf32> to vector<128x32xf32>
    %cst_26 = arith.constant dense<0.000000e+00> : vector<16x32xf32>
    %68 = tpu.matmul %66, %67, %cst_26 {dimension_numbers = #tpu.dot_dimension_numbers<[1], [0], [0], [1], [0, 0, 1, 1], [], []>} : vector<16x128xf32>, vector<128x32xf32>, vector<16x32xf32> -> vector<16x32xf32>
    %69 = arith.addf %48, %68 : vector<16x32xf32>
    %70 = vector.extract_strided_slice %7 {offsets = [0, 384], sizes = [16, 128], strides = [1, 1]} : vector<16x1536xf32> to vector<16x128xf32>
    %71 = vector.extract_strided_slice %7 {offsets = [0, 896], sizes = [16, 128], strides = [1, 1]} : vector<16x1536xf32> to vector<16x128xf32>
    %72 = vector.extract_strided_slice %7 {offsets = [0, 1408], sizes = [16, 128], strides = [1, 1]} : vector<16x1536xf32> to vector<16x128xf32>
    %cst_27 = arith.constant dense<0.000000e+00> : vector<16x16xf32>
    %73 = tpu.matmul %70, %71, %cst_27 {dimension_numbers = #tpu.dot_dimension_numbers<[1], [1], [0], [0], [0, 0, 1, 0], [], []>} : vector<16x128xf32>, vector<16x128xf32>, vector<16x16xf32> -> vector<16x16xf32>
    %cst_28 = arith.constant 0.353553385 : f32
    %74 = vector.broadcast %cst_28 : f32 to vector<16x16xf32>
    %75 = arith.mulf %73, %74 : vector<16x16xf32>
    %76 = arith.addf %75, %1 : vector<16x16xf32>
    %cst_29 = arith.constant dense<0xFF800000> : vector<16xf32>
    %77 = vector.multi_reduction <maximumf>, %76, %cst_29 [1] : vector<16x16xf32> to vector<16xf32>
    %78 = vector.shape_cast %77 : vector<16xf32> to vector<16x1xf32>
    %79 = vector.broadcast %78 : vector<16x1xf32> to vector<16x16xf32>
    %80 = arith.subf %76, %79 : vector<16x16xf32>
    %81 = math.exp %80 : vector<16x16xf32>
    %cst_30 = arith.constant dense<0.000000e+00> : vector<16xf32>
    %82 = vector.multi_reduction <add>, %81, %cst_30 [1] : vector<16x16xf32> to vector<16xf32>
    %83 = vector.shape_cast %82 : vector<16xf32> to vector<16x1xf32>
    %84 = tpu.reciprocal %83 {approx = true} : vector<16x1xf32> -> vector<16x1xf32>
    %85 = vector.broadcast %84 : vector<16x1xf32> to vector<16x16xf32>
    %86 = arith.mulf %81, %85 : vector<16x16xf32>
    %cst_31 = arith.constant dense<0.000000e+00> : vector<16x128xf32>
    %87 = tpu.matmul %86, %72, %cst_31 {dimension_numbers = #tpu.dot_dimension_numbers<[1], [0], [0], [1], [0, 0, 1, 1], [], []>} : vector<16x16xf32>, vector<16x128xf32>, vector<16x128xf32> -> vector<16x128xf32>
    %88 = vector.extract_strided_slice %2 {offsets = [384, 0], sizes = [128, 32], strides = [1, 1]} : vector<512x32xf32> to vector<128x32xf32>
    %cst_32 = arith.constant dense<0.000000e+00> : vector<16x32xf32>
    %89 = tpu.matmul %87, %88, %cst_32 {dimension_numbers = #tpu.dot_dimension_numbers<[1], [0], [0], [1], [0, 0, 1, 1], [], []>} : vector<16x128xf32>, vector<128x32xf32>, vector<16x32xf32> -> vector<16x32xf32>
    %90 = arith.addf %69, %89 : vector<16x32xf32>
    %c0_33 = arith.constant 0 : index
    %c0_34 = arith.constant 0 : index
    %91 = vector.load %arg5[%c0_33, %c0_34] : memref<1x32xf32, #tpu.memory_space<vmem>>, vector<1x32xf32>
    %92 = vector.broadcast %91 : vector<1x32xf32> to vector<16x32xf32>
    %93 = arith.addf %90, %92 : vector<16x32xf32>
    %94 = arith.addf %0, %93 : vector<16x32xf32>
    %c0_35 = arith.constant 0 : index
    %c0_36 = arith.constant 0 : index
    %95 = vector.load %arg6[%c0_35, %c0_36] : memref<1x32xf32, #tpu.memory_space<vmem>>, vector<1x32xf32>
    %c0_37 = arith.constant 0 : index
    %c0_38 = arith.constant 0 : index
    %96 = vector.load %arg7[%c0_37, %c0_38] : memref<1x32xf32, #tpu.memory_space<vmem>>, vector<1x32xf32>
    %cst_39 = arith.constant dense<0.000000e+00> : vector<16xf32>
    %97 = vector.multi_reduction <add>, %94, %cst_39 [1] : vector<16x32xf32> to vector<16xf32>
    %98 = vector.shape_cast %97 : vector<16xf32> to vector<16x1xf32>
    %cst_40 = arith.constant 3.200000e+01 : f32
    %99 = vector.broadcast %cst_40 : f32 to vector<16x1xf32>
    %100 = arith.divf %98, %99 : vector<16x1xf32>
    %101 = vector.broadcast %100 : vector<16x1xf32> to vector<16x32xf32>
    %102 = arith.subf %94, %101 : vector<16x32xf32>
    %103 = arith.mulf %102, %102 : vector<16x32xf32>
    %cst_41 = arith.constant dense<0.000000e+00> : vector<16xf32>
    %104 = vector.multi_reduction <add>, %103, %cst_41 [1] : vector<16x32xf32> to vector<16xf32>
    %105 = vector.shape_cast %104 : vector<16xf32> to vector<16x1xf32>
    %cst_42 = arith.constant 3.200000e+01 : f32
    %106 = vector.broadcast %cst_42 : f32 to vector<16x1xf32>
    %107 = arith.divf %105, %106 : vector<16x1xf32>
    %108 = vector.broadcast %100 : vector<16x1xf32> to vector<16x32xf32>
    %109 = arith.subf %94, %108 : vector<16x32xf32>
    %cst_43 = arith.constant 9.99999974E-6 : f32
    %110 = vector.broadcast %cst_43 : f32 to vector<16x1xf32>
    %111 = arith.addf %107, %110 : vector<16x1xf32>
    %112 = math.rsqrt %111 : vector<16x1xf32>
    %113 = vector.broadcast %112 : vector<16x1xf32> to vector<16x32xf32>
    %114 = arith.mulf %109, %113 : vector<16x32xf32>
    %115 = vector.broadcast %95 : vector<1x32xf32> to vector<16x32xf32>
    %116 = arith.mulf %114, %115 : vector<16x32xf32>
    %117 = vector.broadcast %96 : vector<1x32xf32> to vector<16x32xf32>
    %118 = arith.addf %116, %117 : vector<16x32xf32>
    %c0_44 = arith.constant 0 : index
    %c0_45 = arith.constant 0 : index
    %119 = vector.load %arg8[%c0_44, %c0_45] : memref<32x128xf32, #tpu.memory_space<vmem>>, vector<32x128xf32>
    %cst_46 = arith.constant dense<0.000000e+00> : vector<16x128xf32>
    %120 = tpu.matmul %118, %119, %cst_46 {dimension_numbers = #tpu.dot_dimension_numbers<[1], [0], [0], [1], [0, 0, 1, 1], [], []>} : vector<16x32xf32>, vector<32x128xf32>, vector<16x128xf32> -> vector<16x128xf32>
    %c0_47 = arith.constant 0 : index
    %c0_48 = arith.constant 0 : index
    %121 = vector.load %arg9[%c0_47, %c0_48] : memref<1x128xf32, #tpu.memory_space<vmem>>, vector<1x128xf32>
    %122 = vector.broadcast %121 : vector<1x128xf32> to vector<16x128xf32>
    %123 = arith.addf %120, %122 : vector<16x128xf32>
    %cst_49 = arith.constant 0.000000e+00 : f32
    %124 = vector.broadcast %cst_49 : f32 to vector<16x128xf32>
    %125 = arith.maximumf %123, %124 : vector<16x128xf32>
    %c0_50 = arith.constant 0 : index
    %c0_51 = arith.constant 0 : index
    %126 = vector.load %arg10[%c0_50, %c0_51] : memref<128x32xf32, #tpu.memory_space<vmem>>, vector<128x32xf32>
    %cst_52 = arith.constant dense<0.000000e+00> : vector<16x32xf32>
    %127 = tpu.matmul %125, %126, %cst_52 {dimension_numbers = #tpu.dot_dimension_numbers<[1], [0], [0], [1], [0, 0, 1, 1], [], []>} : vector<16x128xf32>, vector<128x32xf32>, vector<16x32xf32> -> vector<16x32xf32>
    %c0_53 = arith.constant 0 : index
    %c0_54 = arith.constant 0 : index
    %128 = vector.load %arg11[%c0_53, %c0_54] : memref<1x32xf32, #tpu.memory_space<vmem>>, vector<1x32xf32>
    %129 = vector.broadcast %128 : vector<1x32xf32> to vector<16x32xf32>
    %130 = arith.addf %127, %129 : vector<16x32xf32>
    %131 = arith.addf %118, %130 : vector<16x32xf32>
    %c0_55 = arith.constant 0 : index
    %c0_56 = arith.constant 0 : index
    %132 = vector.load %arg12[%c0_55, %c0_56] : memref<1x32xf32, #tpu.memory_space<vmem>>, vector<1x32xf32>
    %c0_57 = arith.constant 0 : index
    %c0_58 = arith.constant 0 : index
    %133 = vector.load %arg13[%c0_57, %c0_58] : memref<1x32xf32, #tpu.memory_space<vmem>>, vector<1x32xf32>
    %cst_59 = arith.constant dense<0.000000e+00> : vector<16xf32>
    %134 = vector.multi_reduction <add>, %131, %cst_59 [1] : vector<16x32xf32> to vector<16xf32>
    %135 = vector.shape_cast %134 : vector<16xf32> to vector<16x1xf32>
    %cst_60 = arith.constant 3.200000e+01 : f32
    %136 = vector.broadcast %cst_60 : f32 to vector<16x1xf32>
    %137 = arith.divf %135, %136 : vector<16x1xf32>
    %138 = vector.broadcast %137 : vector<16x1xf32> to vector<16x32xf32>
    %139 = arith.subf %131, %138 : vector<16x32xf32>
    %140 = arith.mulf %139, %139 : vector<16x32xf32>
    %cst_61 = arith.constant dense<0.000000e+00> : vector<16xf32>
    %141 = vector.multi_reduction <add>, %140, %cst_61 [1] : vector<16x32xf32> to vector<16xf32>
    %142 = vector.shape_cast %141 : vector<16xf32> to vector<16x1xf32>
    %cst_62 = arith.constant 3.200000e+01 : f32
    %143 = vector.broadcast %cst_62 : f32 to vector<16x1xf32>
    %144 = arith.divf %142, %143 : vector<16x1xf32>
    %145 = vector.broadcast %137 : vector<16x1xf32> to vector<16x32xf32>
    %146 = arith.subf %131, %145 : vector<16x32xf32>
    %cst_63 = arith.constant 9.99999974E-6 : f32
    %147 = vector.broadcast %cst_63 : f32 to vector<16x1xf32>
    %148 = arith.addf %144, %147 : vector<16x1xf32>
    %149 = math.rsqrt %148 : vector<16x1xf32>
    %150 = vector.broadcast %149 : vector<16x1xf32> to vector<16x32xf32>
    %151 = arith.mulf %146, %150 : vector<16x32xf32>
    %152 = vector.broadcast %132 : vector<1x32xf32> to vector<16x32xf32>
    %153 = arith.mulf %151, %152 : vector<16x32xf32>
    %154 = vector.broadcast %133 : vector<1x32xf32> to vector<16x32xf32>
    %155 = arith.addf %153, %154 : vector<16x32xf32>
    %c0_64 = arith.constant 0 : index
    %c0_65 = arith.constant 0 : index
    %156 = vector.load %arg14[%c0_64, %c0_65] : memref<16x32xf32, #tpu.memory_space<vmem>>, vector<16x32xf32>
    tpu.vector_store %arg14[%c0_64, %c0_65], %155 {strides = array<i32>} : memref<16x32xf32, #tpu.memory_space<vmem>>, vector<16x32xf32>,
    return
  }
}

</mosaic_0001>

<llo_original>
// kernel: transformer_block.1
$region0: #{transformer_block.1}
  #allocation0 [shape = 'u32[]', space=smem, size = 0x4, offset = 0x4, fixed_abs, tag = 'smem constant byte address 0x4 - core index']
  #allocation1 [shape = 'u32[144,128]{1,0:T(1,128)}', space=vmem, size = 0x12000, scoped, tag = 'internal scratch']
  %s0 = inlined_call_operand.vmem [shape: f32[16,32], index: 0, kind: input, shape index: {}]
  %s1 = inlined_call_operand.vmem [shape: f32[16,16], index: 1, kind: input, shape index: {}]
  %s2 = inlined_call_operand.vmem [shape: f32[32,1536], index: 2, kind: input, shape index: {}]
  %s3 = inlined_call_operand.vmem [shape: f32[1,1536], index: 3, kind: input, shape index: {}]
  %s4 = inlined_call_operand.vmem [shape: f32[512,32], index: 4, kind: input, shape index: {}]
  %s5 = inlined_call_operand.vmem [shape: f32[1,32], index: 5, kind: input, shape index: {}]
  %s6 = inlined_call_operand.vmem [shape: f32[1,32], index: 6, kind: input, shape index: {}]
  %s7 = inlined_call_operand.vmem [shape: f32[1,32], index: 7, kind: input, shape index: {}]
  %s8 = inlined_call_operand.vmem [shape: f32[32,128], index: 8, kind: input, shape index: {}]
  %s9 = inlined_call_operand.vmem [shape: f32[1,128], index: 9, kind: input, shape index: {}]
  %s10 = inlined_call_operand.vmem [shape: f32[128,32], index: 10, kind: input, shape index: {}]
  %s11 = inlined_call_operand.vmem [shape: f32[1,32], index: 11, kind: input, shape index: {}]
  %s12 = inlined_call_operand.vmem [shape: f32[1,32], index: 12, kind: input, shape index: {}]
  %s13 = inlined_call_operand.vmem [shape: f32[1,32], index: 13, kind: input, shape index: {}]
  %s14 = inlined_call_operand.hbm [shape: f32[16,32], index: 14, kind: output, shape index: {}]
  %s15 = sld [smem:[#allocation0]]
  $region66: #{transformer_block.1} parent=0
    _
  %s17 = ssub.s32 1, %s15
  %s18 = scalar_select 0, %s17, %s15
  $region1: #{transformer_block.1} parent=0
    #allocation2 [shape = 'u8[8192]{0}', space=vmem, size = 0x2000, scoped, tag = 'output window, operand 0, single buffered']
    #allocation3 [shape = 's32[1]{0}', space=sflag, size = 0x4, scoped, tag = 'scoped memory for transformer_block.1']
    %19 = vsyncpa [#allocation3], 0
    // Predicated region
    $region2: #{transformer_block.1} parent=1 // pred_check
      _
    $region3: #{transformer_block.1} parent=1 // pred_check_branch
      %21 = sbr.rel (0) target = $region5
    $region4: #{transformer_block.1} parent=1 // pred_region
      _
    $region5: #{transformer_block.1} parent=1 // pred_fallthru
      _
    // Predicated region
    $region6: #{transformer_block.1} parent=1 // pred_check
      _
    $region7: #{transformer_block.1} parent=1 // pred_check_branch
      %23 = sbr.rel (0) target = $region9
    $region8: #{transformer_block.1} parent=1 // pred_region
      _
    $region9: #{transformer_block.1} parent=1 // pred_fallthru
      _
    // Predicated region
    $region10: #{transformer_block.1} parent=1 // pred_check
      _
    $region11: #{transformer_block.1} parent=1 // pred_check_branch
      %25 = sbr.rel (0) target = $region13
    $region12: #{transformer_block.1} parent=1 // pred_region
      _
    $region13: #{transformer_block.1} parent=1 // pred_fallthru
      _
    // Predicated region
    $region14: #{transformer_block.1} parent=1 // pred_check
      _
    $region15: #{transformer_block.1} parent=1 // pred_check_branch
      %27 = sbr.rel (0) target = $region17
    $region16: #{transformer_block.1} parent=1 // pred_region
      _
    $region17: #{transformer_block.1} parent=1 // pred_fallthru
      _
    // Predicated region
    $region18: #{transformer_block.1} parent=1 // pred_check
      _
    $region19: #{transformer_block.1} parent=1 // pred_check_branch
      %29 = sbr.rel (0) target = $region21
    $region20: #{transformer_block.1} parent=1 // pred_region
      _
    $region21: #{transformer_block.1} parent=1 // pred_fallthru
      _
    // Predicated region
    $region22: #{transformer_block.1} parent=1 // pred_check
      _
    $region23: #{transformer_block.1} parent=1 // pred_check_branch
      %31 = sbr.rel (0) target = $region25
    $region24: #{transformer_block.1} parent=1 // pred_region
      _
    $region25: #{transformer_block.1} parent=1 // pred_fallthru
      _
    // Predicated region
    $region26: #{transformer_block.1} parent=1 // pred_check
      _
    $region27: #{transformer_block.1} parent=1 // pred_check_branch
      %33 = sbr.rel (0) target = $region29
    $region28: #{transformer_block.1} parent=1 // pred_region
      _
    $region29: #{transformer_block.1} parent=1 // pred_fallthru
      _
    // Predicated region
    $region30: #{transformer_block.1} parent=1 // pred_check
      _
    $region31: #{transformer_block.1} parent=1 // pred_check_branch
      %35 = sbr.rel (0) target = $region33
    $region32: #{transformer_block.1} parent=1 // pred_region
      _
    $region33: #{transformer_block.1} parent=1 // pred_fallthru
      _
    // Predicated region
    $region34: #{transformer_block.1} parent=1 // pred_check
      _
    $region35: #{transformer_block.1} parent=1 // pred_check_branch
      %37 = sbr.rel (0) target = $region37
    $region36: #{transformer_block.1} parent=1 // pred_region
      _
    $region37: #{transformer_block.1} parent=1 // pred_fallthru
      _
    // Predicated region
    $region38: #{transformer_block.1} parent=1 // pred_check
      _
    $region39: #{transformer_block.1} parent=1 // pred_check_branch
      %39 = sbr.rel (0) target = $region41
    $region40: #{transformer_block.1} parent=1 // pred_region
      _
    $region41: #{transformer_block.1} parent=1 // pred_fallthru
      _
    // Predicated region
    $region42: #{transformer_block.1} parent=1 // pred_check
      _
    $region43: #{transformer_block.1} parent=1 // pred_check_branch
      %41 = sbr.rel (0) target = $region45
    $region44: #{transformer_block.1} parent=1 // pred_region
      _
    $region45: #{transformer_block.1} parent=1 // pred_fallthru
      _
    // Predicated region
    $region46: #{transformer_block.1} parent=1 // pred_check
      _
    $region47: #{transformer_block.1} parent=1 // pred_check_branch
      %43 = sbr.rel (0) target = $region49
    $region48: #{transformer_block.1} parent=1 // pred_region
      _
    $region49: #{transformer_block.1} parent=1 // pred_fallthru
      _
    // Predicated region
    $region50: #{transformer_block.1} parent=1 // pred_check
      _
    $region51: #{transformer_block.1} parent=1 // pred_check_branch
      %45 = sbr.rel (0) target = $region53
    $region52: #{transformer_block.1} parent=1 // pred_region
      _
    $region53: #{transformer_block.1} parent=1 // pred_fallthru
      _
    // Predicated region
    $region54: #{transformer_block.1} parent=1 // pred_check
      _
    $region55: #{transformer_block.1} parent=1 // pred_check_branch
      %47 = sbr.rel (0) target = $region57
    $region56: #{transformer_block.1} parent=1 // pred_region
      _
    $region57: #{transformer_block.1} parent=1 // pred_fallthru
      _
    %v48 = vld [vmem:[%s0] sm:$0xff]
    %v49 = vld [vmem:[%s0 + $0x8] sm:$0xff]
    %v50 = vld [vmem:[%s1] sm:$0xff]
    %v51 = vld [vmem:[%s1 + $0x8] sm:$0xff]
    %v52 = vld [vmem:[%s4] sm:$0xff]
    %v53 = vld [vmem:[%s4 + $0x8] sm:$0xff]
    %v54 = vld [vmem:[%s4 + $0x10] sm:$0xff]
    %v55 = vld [vmem:[%s4 + $0x18] sm:$0xff]
    %v56 = vld [vmem:[%s4 + $0x20] sm:$0xff]
    %v57 = vld [vmem:[%s4 + $0x28] sm:$0xff]
    %v58 = vld [vmem:[%s4 + $0x30] sm:$0xff]
    %v59 = vld [vmem:[%s4 + $0x38] sm:$0xff]
    %v60 = vld [vmem:[%s4 + $0x40] sm:$0xff]
    %v61 = vld [vmem:[%s4 + $0x48] sm:$0xff]
    %v62 = vld [vmem:[%s4 + $0x50] sm:$0xff]
    %v63 = vld [vmem:[%s4 + $0x58] sm:$0xff]
    %v64 = vld [vmem:[%s4 + $0x60] sm:$0xff]
    %v65 = vld [vmem:[%s4 + $0x68] sm:$0xff]
    %v66 = vld [vmem:[%s4 + $0x70] sm:$0xff]
    %v67 = vld [vmem:[%s4 + $0x78] sm:$0xff]
    %v68 = vld [vmem:[%s4 + $0x80] sm:$0xff]
    %v69 = vld [vmem:[%s4 + $0x88] sm:$0xff]
    %v70 = vld [vmem:[%s4 + $0x90] sm:$0xff]
    %v71 = vld [vmem:[%s4 + $0x98] sm:$0xff]
    %v72 = vld [vmem:[%s4 + $0xa0] sm:$0xff]
    %v73 = vld [vmem:[%s4 + $0xa8] sm:$0xff]
    %v74 = vld [vmem:[%s4 + $0xb0] sm:$0xff]
    %v75 = vld [vmem:[%s4 + $0xb8] sm:$0xff]
    %v76 = vld [vmem:[%s4 + $0xc0] sm:$0xff]
    %v77 = vld [vmem:[%s4 + $0xc8] sm:$0xff]
    %v78 = vld [vmem:[%s4 + $0xd0] sm:$0xff]
    %v79 = vld [vmem:[%s4 + $0xd8] sm:$0xff]
    %v80 = vld [vmem:[%s4 + $0xe0] sm:$0xff]
    %v81 = vld [vmem:[%s4 + $0xe8] sm:$0xff]
    %v82 = vld [vmem:[%s4 + $0xf0] sm:$0xff]
    %v83 = vld [vmem:[%s4 + $0xf8] sm:$0xff]
    %v84 = vld [vmem:[%s4 + $0x100] sm:$0xff]
    %v85 = vld [vmem:[%s4 + $0x108] sm:$0xff]
    %v86 = vld [vmem:[%s4 + $0x110] sm:$0xff]
    %v87 = vld [vmem:[%s4 + $0x118] sm:$0xff]
    %v88 = vld [vmem:[%s4 + $0x120] sm:$0xff]
    %v89 = vld [vmem:[%s4 + $0x128] sm:$0xff]
    %v90 = vld [vmem:[%s4 + $0x130] sm:$0xff]
    %v91 = vld [vmem:[%s4 + $0x138] sm:$0xff]
    %v92 = vld [vmem:[%s4 + $0x140] sm:$0xff]
    %v93 = vld [vmem:[%s4 + $0x148] sm:$0xff]
    %v94 = vld [vmem:[%s4 + $0x150] sm:$0xff]
    %v95 = vld [vmem:[%s4 + $0x158] sm:$0xff]
    %v96 = vld [vmem:[%s4 + $0x160] sm:$0xff]
    %v97 = vld [vmem:[%s4 + $0x168] sm:$0xff]
    %v98 = vld [vmem:[%s4 + $0x170] sm:$0xff]
    %v99 = vld [vmem:[%s4 + $0x178] sm:$0xff]
    %v100 = vld [vmem:[%s4 + $0x180] sm:$0xff]
    %v101 = vld [vmem:[%s4 + $0x188] sm:$0xff]
    %v102 = vld [vmem:[%s4 + $0x190] sm:$0xff]
    %v103 = vld [vmem:[%s4 + $0x198] sm:$0xff]
    %v104 = vld [vmem:[%s4 + $0x1a0] sm:$0xff]
    %v105 = vld [vmem:[%s4 + $0x1a8] sm:$0xff]
    %v106 = vld [vmem:[%s4 + $0x1b0] sm:$0xff]
    %v107 = vld [vmem:[%s4 + $0x1b8] sm:$0xff]
    %v108 = vld [vmem:[%s4 + $0x1c0] sm:$0xff]
    %v109 = vld [vmem:[%s4 + $0x1c8] sm:$0xff]
    %v110 = vld [vmem:[%s4 + $0x1d0] sm:$0xff]
    %v111 = vld [vmem:[%s4 + $0x1d8] sm:$0xff]
    %v112 = vld [vmem:[%s4 + $0x1e0] sm:$0xff]
    %v113 = vld [vmem:[%s4 + $0x1e8] sm:$0xff]
    %v114 = vld [vmem:[%s4 + $0x1f0] sm:$0xff]
    %v115 = vld [vmem:[%s4 + $0x1f8] sm:$0xff]
    %v116 = vld [vmem:[%s2] sm:$0xff]
    %v117 = vld [vmem:[%s2 + $0x8] sm:$0xff]
    %v118 = vld [vmem:[%s2 + $0x10] sm:$0xff]
    %v119 = vld [vmem:[%s2 + $0x18] sm:$0xff]
    %v120 = vld [vmem:[%s2 + $0x20] sm:$0xff]
    %v121 = vld [vmem:[%s2 + $0x28] sm:$0xff]
    %v122 = vld [vmem:[%s2 + $0x30] sm:$0xff]
    %v123 = vld [vmem:[%s2 + $0x38] sm:$0xff]
    %v124 = vld [vmem:[%s2 + $0x40] sm:$0xff]
    %v125 = vld [vmem:[%s2 + $0x48] sm:$0xff]
    %v126 = vld [vmem:[%s2 + $0x50] sm:$0xff]
    %v127 = vld [vmem:[%s2 + $0x58] sm:$0xff]
    %v128 = vld [vmem:[%s2 + $0x60] sm:$0xff]
    %v129 = vld [vmem:[%s2 + $0x68] sm:$0xff]
    %v130 = vld [vmem:[%s2 + $0x70] sm:$0xff]
    %v131 = vld [vmem:[%s2 + $0x78] sm:$0xff]
    %v132 = vld [vmem:[%s2 + $0x80] sm:$0xff]
    %v133 = vld [vmem:[%s2 + $0x88] sm:$0xff]
    %v134 = vld [vmem:[%s2 + $0x90] sm:$0xff]
    %v135 = vld [vmem:[%s2 + $0x98] sm:$0xff]
    %v136 = vld [vmem:[%s2 + $0xa0] sm:$0xff]
    %v137 = vld [vmem:[%s2 + $0xa8] sm:$0xff]
    %v138 = vld [vmem:[%s2 + $0xb0] sm:$0xff]
    %v139 = vld [vmem:[%s2 + $0xb8] sm:$0xff]
    %v140 = vld [vmem:[%s2 + $0xc0] sm:$0xff]
    %v141 = vld [vmem:[%s2 + $0xc8] sm:$0xff]
    %v142 = vld [vmem:[%s2 + $0xd0] sm:$0xff]
    %v143 = vld [vmem:[%s2 + $0xd8] sm:$0xff]
    %v144 = vld [vmem:[%s2 + $0xe0] sm:$0xff]
    %v145 = vld [vmem:[%s2 + $0xe8] sm:$0xff]
    %v146 = vld [vmem:[%s2 + $0xf0] sm:$0xff]
    %v147 = vld [vmem:[%s2 + $0xf8] sm:$0xff]
    %v148 = vld [vmem:[%s2 + $0x100] sm:$0xff]
    %v149 = vld [vmem:[%s2 + $0x108] sm:$0xff]
    %v150 = vld [vmem:[%s2 + $0x110] sm:$0xff]
    %v151 = vld [vmem:[%s2 + $0x118] sm:$0xff]
    %v152 = vld [vmem:[%s2 + $0x120] sm:$0xff]
    %v153 = vld [vmem:[%s2 + $0x128] sm:$0xff]
    %v154 = vld [vmem:[%s2 + $0x130] sm:$0xff]
    %v155 = vld [vmem:[%s2 + $0x138] sm:$0xff]
    %v156 = vld [vmem:[%s2 + $0x140] sm:$0xff]
    %v157 = vld [vmem:[%s2 + $0x148] sm:$0xff]
    %v158 = vld [vmem:[%s2 + $0x150] sm:$0xff]
    %v159 = vld [vmem:[%s2 + $0x158] sm:$0xff]
    %v160 = vld [vmem:[%s2 + $0x160] sm:$0xff]
    %v161 = vld [vmem:[%s2 + $0x168] sm:$0xff]
    %v162 = vld [vmem:[%s2 + $0x170] sm:$0xff]
    %v163 = vld [vmem:[%s2 + $0x178] sm:$0xff]
    %v164 = vld [vmem:[%s3] sm:$0xff]
    %v165 = vld [vmem:[%s3 + $0x8] sm:$0xf]
    %v168 = vlaneseq
    %v169 = vshrl.u32 %v168, 7
    %v170 = vsub.s32 0, %v169
    %v171 = vrot.slane %v164, %v170
    %v172 = vlaneseq
    %v173 = vshrl.u32 %v172, 7
    %v174 = vsub.s32 1, %v173
    %v175 = vrot.slane %v164, %v174
    %v176 = vlaneseq
    %v177 = vshrl.u32 %v176, 7
    %v178 = vsub.s32 2, %v177
    %v179 = vrot.slane %v164, %v178
    %v180 = vlaneseq
    %v181 = vshrl.u32 %v180, 7
    %v182 = vsub.s32 3, %v181
    %v183 = vrot.slane %v164, %v182
    %v184 = vlaneseq
    %v185 = vshrl.u32 %v184, 7
    %v186 = vsub.s32 4, %v185
    %v187 = vrot.slane %v164, %v186
    %v188 = vlaneseq
    %v189 = vshrl.u32 %v188, 7
    %v190 = vsub.s32 5, %v189
    %v191 = vrot.slane %v164, %v190
    %v192 = vlaneseq
    %v193 = vshrl.u32 %v192, 7
    %v194 = vsub.s32 6, %v193
    %v195 = vrot.slane %v164, %v194
    %v196 = vlaneseq
    %v197 = vshrl.u32 %v196, 7
    %v198 = vsub.s32 7, %v197
    %v199 = vrot.slane %v164, %v198
    %v200 = vlaneseq
    %v201 = vshrl.u32 %v200, 7
    %v202 = vsub.s32 0, %v201
    %v203 = vrot.slane %v165, %v202
    %v204 = vlaneseq
    %v205 = vshrl.u32 %v204, 7
    %v206 = vsub.s32 1, %v205
    %v207 = vrot.slane %v165, %v206
    %v208 = vlaneseq
    %v209 = vshrl.u32 %v208, 7
    %v210 = vsub.s32 2, %v209
    %v211 = vrot.slane %v165, %v210
    %v212 = vlaneseq
    %v213 = vshrl.u32 %v212, 7
    %v214 = vsub.s32 3, %v213
    %v215 = vrot.slane %v165, %v214
    %vm228 = vcmask 261120
    %v230 = vsel %vm228, %v48, 0
    %v233 = vsel %vm228, %v49, 0
    %235 = vmatprep.subr.mxu0 0.0
    %236 = vmatpush1.msra.mxu0 0.0
    %237 = vmatprep.subr.mxu0 0.0
    %238 = vmatpush1.msra.mxu0 0.0
    %239 = vmatprep.subr.mxu0 0.0
    %240 = vmatpush1.msra.mxu0 0.0
    %241 = vmatprep.subr.mxu0 0.0
    %242 = vmatpush1.msra.mxu0 0.0
    %243 = vmatprep.subr.mxu0 0.0
    %244 = vmatpush1.msra.mxu0 0.0
    %245 = vmatprep.subr.mxu0 0.0
    %246 = vmatpush1.msra.mxu0 0.0
    %247 = vmatprep.subr.mxu0 0.0
    %248 = vmatpush1.msra.mxu0 0.0
    %249 = vmatprep.subr.mxu0 0.0
    %250 = vmatpush1.msra.mxu0 0.0
    %251 = vmatprep.subr.mxu0 0.0
    %252 = vmatpush1.msra.mxu0 0.0
    %253 = vmatprep.subr.mxu0 0.0
    %254 = vmatpush1.msra.mxu0 0.0
    %255 = vmatprep.subr.mxu0 0.0
    %256 = vmatpush1.msra.mxu0 0.0
    %257 = vmatprep.subr.mxu0 0.0
    %258 = vmatpush1.msra.mxu0 0.0
    %259 = vmatprep.subr.mxu0 %v153
    %260 = vmatpush1.msra.mxu0 %v152
    %261 = vmatprep.subr.mxu0 %v141
    %262 = vmatpush1.msra.mxu0 %v140
    %263 = vmatprep.subr.mxu0 %v129
    %264 = vmatpush1.msra.mxu0 %v128
    %265 = vmatprep.subr.mxu0 %v117
    %266 = vmatpush1.msra.mxu0 %v116
    %267 = vmatprep.subr.mxu0 0.0
    %268 = vmatpush2.msra.mxu0 0.0
    %269 = vmatprep.subr.mxu0 0.0
    %270 = vmatpush2.msra.mxu0 0.0
    %271 = vmatprep.subr.mxu0 0.0
    %272 = vmatpush2.msra.mxu0 0.0
    %273 = vmatprep.subr.mxu0 0.0
    %274 = vmatpush2.msra.mxu0 0.0
    %275 = vmatprep.subr.mxu0 0.0
    %276 = vmatpush2.msra.mxu0 0.0
    %277 = vmatprep.subr.mxu0 0.0
    %278 = vmatpush2.msra.mxu0 0.0
    %279 = vmatprep.subr.mxu0 0.0
    %280 = vmatpush2.msra.mxu0 0.0
    %281 = vmatprep.subr.mxu0 0.0
    %282 = vmatpush2.msra.mxu0 0.0
    %283 = vmatprep.subr.mxu0 0.0
    %284 = vmatpush2.msra.mxu0 0.0
    %285 = vmatprep.subr.mxu0 0.0
    %286 = vmatpush2.msra.mxu0 0.0
    %287 = vmatprep.subr.mxu0 0.0
    %288 = vmatpush2.msra.mxu0 0.0
    %289 = vmatprep.subr.mxu0 0.0
    %290 = vmatpush2.msra.mxu0 0.0
    %291 = vmatprep.subr.mxu0 0.0
    %292 = vmatpush2.msra.mxu0 0.0
    %293 = vmatprep.subr.mxu0 0.0
    %294 = vmatpush2.msra.mxu0 0.0
    %295 = vmatprep.subr.mxu0 0.0
    %296 = vmatpush2.msra.mxu0 0.0
    %297 = vmatprep.subr.mxu0 0.0
    %298 = vmatpush2.msra.mxu0 0.0
    %299 = vmatprep.mubr.f32.mxu0 0.0
    %300 = vmatmul.mubr.f32.gmra.mxu0 %v230
    %v301 = vpop.f32.mrf.mxu0
    %v302 = vadd.f32 %v171, %v301
    %v303 = vpop.f32.mrf.mxu0
    %v304 = vadd.f32 %v175, %v303
    %305 = vmatprep.mubr.f32.mxu0 0.0
    %306 = vmatmul.mubr.f32.gmra.mxu0 %v233
    %v307 = vpop.f32.mrf.mxu0
    %v308 = vadd.f32 %v171, %v307
    %v309 = vpop.f32.mrf.mxu0
    %v310 = vadd.f32 %v175, %v309
    %311 = vdwg.mxu0
    %312 = vmatprep.subr.mxu0 0.0
    %313 = vmatpush1.msra.mxu0 0.0
    %314 = vmatprep.subr.mxu0 0.0
    %315 = vmatpush1.msra.mxu0 0.0
    %316 = vmatprep.subr.mxu0 0.0
    %317 = vmatpush1.msra.mxu0 0.0
    %318 = vmatprep.subr.mxu0 0.0
    %319 = vmatpush1.msra.mxu0 0.0
    %320 = vmatprep.subr.mxu0 0.0
    %321 = vmatpush1.msra.mxu0 0.0
    %322 = vmatprep.subr.mxu0 0.0
    %323 = vmatpush1.msra.mxu0 0.0
    %324 = vmatprep.subr.mxu0 0.0
    %325 = vmatpush1.msra.mxu0 0.0
    %326 = vmatprep.subr.mxu0 0.0
    %327 = vmatpush1.msra.mxu0 0.0
    %328 = vmatprep.subr.mxu0 0.0
    %329 = vmatpush1.msra.mxu0 0.0
    %330 = vmatprep.subr.mxu0 0.0
    %331 = vmatpush1.msra.mxu0 0.0
    %332 = vmatprep.subr.mxu0 0.0
    %333 = vmatpush1.msra.mxu0 0.0
    %334 = vmatprep.subr.mxu0 0.0
    %335 = vmatpush1.msra.mxu0 0.0
    %336 = vmatprep.subr.mxu0 %v155
    %337 = vmatpush1.msra.mxu0 %v154
    %338 = vmatprep.subr.mxu0 %v143
    %339 = vmatpush1.msra.mxu0 %v142
    %340 = vmatprep.subr.mxu0 %v131
    %341 = vmatpush1.msra.mxu0 %v130
    %342 = vmatprep.subr.mxu0 %v119
    %343 = vmatpush1.msra.mxu0 %v118
    %344 = vmatprep.subr.mxu0 0.0
    %345 = vmatpush2.msra.mxu0 0.0
    %346 = vmatprep.subr.mxu0 0.0
    %347 = vmatpush2.msra.mxu0 0.0
    %348 = vmatprep.subr.mxu0 0.0
    %349 = vmatpush2.msra.mxu0 0.0
    %350 = vmatprep.subr.mxu0 0.0
    %351 = vmatpush2.msra.mxu0 0.0
    %352 = vmatprep.subr.mxu0 0.0
    %353 = vmatpush2.msra.mxu0 0.0
    %354 = vmatprep.subr.mxu0 0.0
    %355 = vmatpush2.msra.mxu0 0.0
    %356 = vmatprep.subr.mxu0 0.0
    %357 = vmatpush2.msra.mxu0 0.0
    %358 = vmatprep.subr.mxu0 0.0
    %359 = vmatpush2.msra.mxu0 0.0
    %360 = vmatprep.subr.mxu0 0.0
    %361 = vmatpush2.msra.mxu0 0.0
    %362 = vmatprep.subr.mxu0 0.0
    %363 = vmatpush2.msra.mxu0 0.0
    %364 = vmatprep.subr.mxu0 0.0
    %365 = vmatpush2.msra.mxu0 0.0
    %366 = vmatprep.subr.mxu0 0.0
    %367 = vmatpush2.msra.mxu0 0.0
    %368 = vmatprep.subr.mxu0 0.0
    %369 = vmatpush2.msra.mxu0 0.0
    %370 = vmatprep.subr.mxu0 0.0
    %371 = vmatpush2.msra.mxu0 0.0
    %372 = vmatprep.subr.mxu0 0.0
    %373 = vmatpush2.msra.mxu0 0.0
    %374 = vmatprep.subr.mxu0 0.0
    %375 = vmatpush2.msra.mxu0 0.0
    %376 = vmatprep.mubr.f32.mxu0 0.0
    %377 = vmatmul.mubr.f32.gmra.mxu0 %v230
    %v378 = vpop.f32.mrf.mxu0
    %v379 = vadd.f32 %v179, %v378
    %v380 = vpop.f32.mrf.mxu0
    %v381 = vadd.f32 %v183, %v380
    %382 = vmatprep.mubr.f32.mxu0 0.0
    %383 = vmatmul.mubr.f32.gmra.mxu0 %v233
    %v384 = vpop.f32.mrf.mxu0
    %v385 = vadd.f32 %v179, %v384
    %v386 = vpop.f32.mrf.mxu0
    %v387 = vadd.f32 %v183, %v386
    %388 = vdwg.mxu0
    %389 = vmatprep.subr.mxu0 0.0
    %390 = vmatpush1.msra.mxu0 0.0
    %391 = vmatprep.subr.mxu0 0.0
    %392 = vmatpush1.msra.mxu0 0.0
    %393 = vmatprep.subr.mxu0 0.0
    %394 = vmatpush1.msra.mxu0 0.0
    %395 = vmatprep.subr.mxu0 0.0
    %396 = vmatpush1.msra.mxu0 0.0
    %397 = vmatprep.subr.mxu0 0.0
    %398 = vmatpush1.msra.mxu0 0.0
    %399 = vmatprep.subr.mxu0 0.0
    %400 = vmatpush1.msra.mxu0 0.0
    %401 = vmatprep.subr.mxu0 0.0
    %402 = vmatpush1.msra.mxu0 0.0
    %403 = vmatprep.subr.mxu0 0.0
    %404 = vmatpush1.msra.mxu0 0.0
    %405 = vmatprep.subr.mxu0 0.0
    %406 = vmatpush1.msra.mxu0 0.0
    %407 = vmatprep.subr.mxu0 0.0
    %408 = vmatpush1.msra.mxu0 0.0
    %409 = vmatprep.subr.mxu0 0.0
    %410 = vmatpush1.msra.mxu0 0.0
    %411 = vmatprep.subr.mxu0 0.0
    %412 = vmatpush1.msra.mxu0 0.0
    %413 = vmatprep.subr.mxu0 %v157
    %414 = vmatpush1.msra.mxu0 %v156
    %415 = vmatprep.subr.mxu0 %v145
    %416 = vmatpush1.msra.mxu0 %v144
    %417 = vmatprep.subr.mxu0 %v133
    %418 = vmatpush1.msra.mxu0 %v132
    %419 = vmatprep.subr.mxu0 %v121
    %420 = vmatpush1.msra.mxu0 %v120
    %421 = vmatprep.subr.mxu0 0.0
    %422 = vmatpush2.msra.mxu0 0.0
    %423 = vmatprep.subr.mxu0 0.0
    %424 = vmatpush2.msra.mxu0 0.0
    %425 = vmatprep.subr.mxu0 0.0
    %426 = vmatpush2.msra.mxu0 0.0
    %427 = vmatprep.subr.mxu0 0.0
    %428 = vmatpush2.msra.mxu0 0.0
    %429 = vmatprep.subr.mxu0 0.0
    %430 = vmatpush2.msra.mxu0 0.0
    %431 = vmatprep.subr.mxu0 0.0
    %432 = vmatpush2.msra.mxu0 0.0
    %433 = vmatprep.subr.mxu0 0.0
    %434 = vmatpush2.msra.mxu0 0.0
    %435 = vmatprep.subr.mxu0 0.0
    %436 = vmatpush2.msra.mxu0 0.0
    %437 = vmatprep.subr.mxu0 0.0
    %438 = vmatpush2.msra.mxu0 0.0
    %439 = vmatprep.subr.mxu0 0.0
    %440 = vmatpush2.msra.mxu0 0.0
    %441 = vmatprep.subr.mxu0 0.0
    %442 = vmatpush2.msra.mxu0 0.0
    %443 = vmatprep.subr.mxu0 0.0
    %444 = vmatpush2.msra.mxu0 0.0
    %445 = vmatprep.subr.mxu0 0.0
    %446 = vmatpush2.msra.mxu0 0.0
    %447 = vmatprep.subr.mxu0 0.0
    %448 = vmatpush2.msra.mxu0 0.0
    %449 = vmatprep.subr.mxu0 0.0
    %450 = vmatpush2.msra.mxu0 0.0
    %451 = vmatprep.subr.mxu0 0.0
    %452 = vmatpush2.msra.mxu0 0.0
    %453 = vmatprep.mubr.f32.mxu0 0.0
    %454 = vmatmul.mubr.f32.gmra.mxu0 %v230
    %v455 = vpop.f32.mrf.mxu0
    %v456 = vadd.f32 %v187, %v455
    %v457 = vpop.f32.mrf.mxu0
    %v458 = vadd.f32 %v191, %v457
    %459 = vmatprep.mubr.f32.mxu0 0.0
    %460 = vmatmul.mubr.f32.gmra.mxu0 %v233
    %v461 = vpop.f32.mrf.mxu0
    %v462 = vadd.f32 %v187, %v461
    %v463 = vpop.f32.mrf.mxu0
    %v464 = vadd.f32 %v191, %v463
    %465 = vdwg.mxu0
    %466 = vmatprep.subr.mxu0 0.0
    %467 = vmatpush1.msra.mxu0 0.0
    %468 = vmatprep.subr.mxu0 0.0
    %469 = vmatpush1.msra.mxu0 0.0
    %470 = vmatprep.subr.mxu0 0.0
    %471 = vmatpush1.msra.mxu0 0.0
    %472 = vmatprep.subr.mxu0 0.0
    %473 = vmatpush1.msra.mxu0 0.0
    %474 = vmatprep.subr.mxu0 0.0
    %475 = vmatpush1.msra.mxu0 0.0
    %476 = vmatprep.subr.mxu0 0.0
    %477 = vmatpush1.msra.mxu0 0.0
    %478 = vmatprep.subr.mxu0 0.0
    %479 = vmatpush1.msra.mxu0 0.0
    %480 = vmatprep.subr.mxu0 0.0
    %481 = vmatpush1.msra.mxu0 0.0
    %482 = vmatprep.subr.mxu0 0.0
    %483 = vmatpush1.msra.mxu0 0.0
    %484 = vmatprep.subr.mxu0 0.0
    %485 = vmatpush1.msra.mxu0 0.0
    %486 = vmatprep.subr.mxu0 0.0
    %487 = vmatpush1.msra.mxu0 0.0
    %488 = vmatprep.subr.mxu0 0.0
    %489 = vmatpush1.msra.mxu0 0.0
    %490 = vmatprep.subr.mxu0 %v159
    %491 = vmatpush1.msra.mxu0 %v158
    %492 = vmatprep.subr.mxu0 %v147
    %493 = vmatpush1.msra.mxu0 %v146
    %494 = vmatprep.subr.mxu0 %v135
    %495 = vmatpush1.msra.mxu0 %v134
    %496 = vmatprep.subr.mxu0 %v123
    %497 = vmatpush1.msra.mxu0 %v122
    %498 = vmatprep.subr.mxu0 0.0
    %499 = vmatpush2.msra.mxu0 0.0
    %500 = vmatprep.subr.mxu0 0.0
    %501 = vmatpush2.msra.mxu0 0.0
    %502 = vmatprep.subr.mxu0 0.0
    %503 = vmatpush2.msra.mxu0 0.0
    %504 = vmatprep.subr.mxu0 0.0
    %505 = vmatpush2.msra.mxu0 0.0
    %506 = vmatprep.subr.mxu0 0.0
    %507 = vmatpush2.msra.mxu0 0.0
    %508 = vmatprep.subr.mxu0 0.0
    %509 = vmatpush2.msra.mxu0 0.0
    %510 = vmatprep.subr.mxu0 0.0
    %511 = vmatpush2.msra.mxu0 0.0
    %512 = vmatprep.subr.mxu0 0.0
    %513 = vmatpush2.msra.mxu0 0.0
    %514 = vmatprep.subr.mxu0 0.0
    %515 = vmatpush2.msra.mxu0 0.0
    %516 = vmatprep.subr.mxu0 0.0
    %517 = vmatpush2.msra.mxu0 0.0
    %518 = vmatprep.subr.mxu0 0.0
    %519 = vmatpush2.msra.mxu0 0.0
    %520 = vmatprep.subr.mxu0 0.0
    %521 = vmatpush2.msra.mxu0 0.0
    %522 = vmatprep.subr.mxu0 0.0
    %523 = vmatpush2.msra.mxu0 0.0
    %524 = vmatprep.subr.mxu0 0.0
    %525 = vmatpush2.msra.mxu0 0.0
    %526 = vmatprep.subr.mxu0 0.0
    %527 = vmatpush2.msra.mxu0 0.0
    %528 = vmatprep.subr.mxu0 0.0
    %529 = vmatpush2.msra.mxu0 0.0
    %530 = vmatprep.mubr.f32.mxu0 0.0
    %531 = vmatmul.mubr.f32.gmra.mxu0 %v230
    %v532 = vpop.f32.mrf.mxu0
    %v533 = vadd.f32 %v195, %v532
    %v534 = vpop.f32.mrf.mxu0
    %v535 = vadd.f32 %v199, %v534
    %536 = vmatprep.mubr.f32.mxu0 0.0
    %537 = vmatmul.mubr.f32.gmra.mxu0 %v233
    %v538 = vpop.f32.mrf.mxu0
    %v539 = vadd.f32 %v195, %v538
    %v540 = vpop.f32.mrf.mxu0
    %v541 = vadd.f32 %v199, %v540
    %542 = vdwg.mxu0
    %543 = vmatprep.subr.mxu0 0.0
    %544 = vmatpush1.msra.mxu0 0.0
    %545 = vmatprep.subr.mxu0 0.0
    %546 = vmatpush1.msra.mxu0 0.0
    %547 = vmatprep.subr.mxu0 0.0
    %548 = vmatpush1.msra.mxu0 0.0
    %549 = vmatprep.subr.mxu0 0.0
    %550 = vmatpush1.msra.mxu0 0.0
    %551 = vmatprep.subr.mxu0 0.0
    %552 = vmatpush1.msra.mxu0 0.0
    %553 = vmatprep.subr.mxu0 0.0
    %554 = vmatpush1.msra.mxu0 0.0
    %555 = vmatprep.subr.mxu0 0.0
    %556 = vmatpush1.msra.mxu0 0.0
    %557 = vmatprep.subr.mxu0 0.0
    %558 = vmatpush1.msra.mxu0 0.0
    %559 = vmatprep.subr.mxu0 0.0
    %560 = vmatpush1.msra.mxu0 0.0
    %561 = vmatprep.subr.mxu0 0.0
    %562 = vmatpush1.msra.mxu0 0.0
    %563 = vmatprep.subr.mxu0 0.0
    %564 = vmatpush1.msra.mxu0 0.0
    %565 = vmatprep.subr.mxu0 0.0
    %566 = vmatpush1.msra.mxu0 0.0
    %567 = vmatprep.subr.mxu0 %v161
    %568 = vmatpush1.msra.mxu0 %v160
    %569 = vmatprep.subr.mxu0 %v149
    %570 = vmatpush1.msra.mxu0 %v148
    %571 = vmatprep.subr.mxu0 %v137
    %572 = vmatpush1.msra.mxu0 %v136
    %573 = vmatprep.subr.mxu0 %v125
    %574 = vmatpush1.msra.mxu0 %v124
    %575 = vmatprep.subr.mxu0 0.0
    %576 = vmatpush2.msra.mxu0 0.0
    %577 = vmatprep.subr.mxu0 0.0
    %578 = vmatpush2.msra.mxu0 0.0
    %579 = vmatprep.subr.mxu0 0.0
    %580 = vmatpush2.msra.mxu0 0.0
    %581 = vmatprep.subr.mxu0 0.0
    %582 = vmatpush2.msra.mxu0 0.0
    %583 = vmatprep.subr.mxu0 0.0
    %584 = vmatpush2.msra.mxu0 0.0
    %585 = vmatprep.subr.mxu0 0.0
    %586 = vmatpush2.msra.mxu0 0.0
    %587 = vmatprep.subr.mxu0 0.0
    %588 = vmatpush2.msra.mxu0 0.0
    %589 = vmatprep.subr.mxu0 0.0
    %590 = vmatpush2.msra.mxu0 0.0
    %591 = vmatprep.subr.mxu0 0.0
    %592 = vmatpush2.msra.mxu0 0.0
    %593 = vmatprep.subr.mxu0 0.0
    %594 = vmatpush2.msra.mxu0 0.0
    %595 = vmatprep.subr.mxu0 0.0
    %596 = vmatpush2.msra.mxu0 0.0
    %597 = vmatprep.subr.mxu0 0.0
    %598 = vmatpush2.msra.mxu0 0.0
    %599 = vmatprep.subr.mxu0 0.0
    %600 = vmatpush2.msra.mxu0 0.0
    %601 = vmatprep.subr.mxu0 0.0
    %602 = vmatpush2.msra.mxu0 0.0
    %603 = vmatprep.subr.mxu0 0.0
    %604 = vmatpush2.msra.mxu0 0.0
    %605 = vmatprep.subr.mxu0 0.0
    %606 = vmatpush2.msra.mxu0 0.0
    %607 = vmatprep.mubr.f32.mxu0 0.0
    %608 = vmatmul.mubr.f32.gmra.mxu0 %v230
    %v609 = vpop.f32.mrf.mxu0
    %v610 = vadd.f32 %v203, %v609
    %v611 = vpop.f32.mrf.mxu0
    %v612 = vadd.f32 %v207, %v611
    %613 = vmatprep.mubr.f32.mxu0 0.0
    %614 = vmatmul.mubr.f32.gmra.mxu0 %v233
    %v615 = vpop.f32.mrf.mxu0
    %v616 = vadd.f32 %v203, %v615
    %v617 = vpop.f32.mrf.mxu0
    %v618 = vadd.f32 %v207, %v617
    %619 = vdwg.mxu0
    %620 = vmatprep.subr.mxu0 0.0
    %621 = vmatpush1.msra.mxu0 0.0
    %622 = vmatprep.subr.mxu0 0.0
    %623 = vmatpush1.msra.mxu0 0.0
    %624 = vmatprep.subr.mxu0 0.0
    %625 = vmatpush1.msra.mxu0 0.0
    %626 = vmatprep.subr.mxu0 0.0
    %627 = vmatpush1.msra.mxu0 0.0
    %628 = vmatprep.subr.mxu0 0.0
    %629 = vmatpush1.msra.mxu0 0.0
    %630 = vmatprep.subr.mxu0 0.0
    %631 = vmatpush1.msra.mxu0 0.0
    %632 = vmatprep.subr.mxu0 0.0
    %633 = vmatpush1.msra.mxu0 0.0
    %634 = vmatprep.subr.mxu0 0.0
    %635 = vmatpush1.msra.mxu0 0.0
    %636 = vmatprep.subr.mxu0 0.0
    %637 = vmatpush1.msra.mxu0 0.0
    %638 = vmatprep.subr.mxu0 0.0
    %639 = vmatpush1.msra.mxu0 0.0
    %640 = vmatprep.subr.mxu0 0.0
    %641 = vmatpush1.msra.mxu0 0.0
    %642 = vmatprep.subr.mxu0 0.0
    %643 = vmatpush1.msra.mxu0 0.0
    %644 = vmatprep.subr.mxu0 %v163
    %645 = vmatpush1.msra.mxu0 %v162
    %646 = vmatprep.subr.mxu0 %v151
    %647 = vmatpush1.msra.mxu0 %v150
    %648 = vmatprep.subr.mxu0 %v139
    %649 = vmatpush1.msra.mxu0 %v138
    %650 = vmatprep.subr.mxu0 %v127
    %651 = vmatpush1.msra.mxu0 %v126
    %652 = vmatprep.subr.mxu0 0.0
    %653 = vmatpush2.msra.mxu0 0.0
    %654 = vmatprep.subr.mxu0 0.0
    %655 = vmatpush2.msra.mxu0 0.0
    %656 = vmatprep.subr.mxu0 0.0
    %657 = vmatpush2.msra.mxu0 0.0
    %658 = vmatprep.subr.mxu0 0.0
    %659 = vmatpush2.msra.mxu0 0.0
    %660 = vmatprep.subr.mxu0 0.0
    %661 = vmatpush2.msra.mxu0 0.0
    %662 = vmatprep.subr.mxu0 0.0
    %663 = vmatpush2.msra.mxu0 0.0
    %664 = vmatprep.subr.mxu0 0.0
    %665 = vmatpush2.msra.mxu0 0.0
    %666 = vmatprep.subr.mxu0 0.0
    %667 = vmatpush2.msra.mxu0 0.0
    %668 = vmatprep.subr.mxu0 0.0
    %669 = vmatpush2.msra.mxu0 0.0
    %670 = vmatprep.subr.mxu0 0.0
    %671 = vmatpush2.msra.mxu0 0.0
    %672 = vmatprep.subr.mxu0 0.0
    %673 = vmatpush2.msra.mxu0 0.0
    %674 = vmatprep.subr.mxu0 0.0
    %675 = vmatpush2.msra.mxu0 0.0
    %676 = vmatprep.subr.mxu0 0.0
    %677 = vmatpush2.msra.mxu0 0.0
    %678 = vmatprep.subr.mxu0 0.0
    %679 = vmatpush2.msra.mxu0 0.0
    %680 = vmatprep.subr.mxu0 0.0
    %681 = vmatpush2.msra.mxu0 0.0
    %682 = vmatprep.subr.mxu0 0.0
    %683 = vmatpush2.msra.mxu0 0.0
    %684 = vmatprep.mubr.f32.mxu0 0.0
    %685 = vmatmul.mubr.f32.gmra.mxu0 %v230
    %v686 = vpop.f32.mrf.mxu0
    %v687 = vadd.f32 %v211, %v686
    %v688 = vpop.f32.mrf.mxu0
    %v689 = vadd.f32 %v215, %v688
    %690 = vmatprep.mubr.f32.mxu0 0.0
    %691 = vmatmul.mubr.f32.gmra.mxu0 %v233
    %v692 = vpop.f32.mrf.mxu0
    %v693 = vadd.f32 %v211, %v692
    %v694 = vpop.f32.mrf.mxu0
    %v695 = vadd.f32 %v215, %v694
    %696 = vdwg.mxu0
    %697 = vmatprep.subr.mxu0 0.0
    %698 = vmatpush1.xpose.msra.mxu0 0.0
    %699 = vmatprep.subr.mxu0 0.0
    %700 = vmatpush1.xpose.msra.mxu0 0.0
    %701 = vmatprep.subr.mxu0 0.0
    %702 = vmatpush1.xpose.msra.mxu0 0.0
    %703 = vmatprep.subr.mxu0 0.0
    %704 = vmatpush1.xpose.msra.mxu0 0.0
    %705 = vmatprep.subr.mxu0 0.0
    %706 = vmatpush1.xpose.msra.mxu0 0.0
    %707 = vmatprep.subr.mxu0 0.0
    %708 = vmatpush1.xpose.msra.mxu0 0.0
    %709 = vmatprep.subr.mxu0 0.0
    %710 = vmatpush1.xpose.msra.mxu0 0.0
    %711 = vmatprep.subr.mxu0 0.0
    %712 = vmatpush1.xpose.msra.mxu0 0.0
    %713 = vmatprep.subr.mxu0 0.0
    %714 = vmatpush1.xpose.msra.mxu0 0.0
    %715 = vmatprep.subr.mxu0 0.0
    %716 = vmatpush1.xpose.msra.mxu0 0.0
    %717 = vmatprep.subr.mxu0 0.0
    %718 = vmatpush1.xpose.msra.mxu0 0.0
    %719 = vmatprep.subr.mxu0 0.0
    %720 = vmatpush1.xpose.msra.mxu0 0.0
    %721 = vmatprep.subr.mxu0 0.0
    %722 = vmatpush1.xpose.msra.mxu0 0.0
    %723 = vmatprep.subr.mxu0 0.0
    %724 = vmatpush1.xpose.msra.mxu0 0.0
    %725 = vmatprep.subr.mxu0 0.0
    %726 = vmatpush1.xpose.msra.mxu0 %v462
    %727 = vmatprep.subr.mxu0 0.0
    %728 = vmatpush1.xpose.msra.mxu0 %v456
    %729 = vmatprep.subr.mxu0 0.0
    %730 = vmatpush2.xpose.msra.mxu0 0.0
    %731 = vmatprep.subr.mxu0 0.0
    %732 = vmatpush2.xpose.msra.mxu0 0.0
    %733 = vmatprep.subr.mxu0 0.0
    %734 = vmatpush2.xpose.msra.mxu0 0.0
    %735 = vmatprep.subr.mxu0 0.0
    %736 = vmatpush2.xpose.msra.mxu0 0.0
    %737 = vmatprep.subr.mxu0 0.0
    %738 = vmatpush2.xpose.msra.mxu0 0.0
    %739 = vmatprep.subr.mxu0 0.0
    %740 = vmatpush2.xpose.msra.mxu0 0.0
    %741 = vmatprep.subr.mxu0 0.0
    %742 = vmatpush2.xpose.msra.mxu0 0.0
    %743 = vmatprep.subr.mxu0 0.0
    %744 = vmatpush2.xpose.msra.mxu0 0.0
    %745 = vmatprep.subr.mxu0 0.0
    %746 = vmatpush2.xpose.msra.mxu0 0.0
    %747 = vmatprep.subr.mxu0 0.0
    %748 = vmatpush2.xpose.msra.mxu0 0.0
    %749 = vmatprep.subr.mxu0 0.0
    %750 = vmatpush2.xpose.msra.mxu0 0.0
    %751 = vmatprep.subr.mxu0 0.0
    %752 = vmatpush2.xpose.msra.mxu0 0.0
    %753 = vmatprep.subr.mxu0 0.0
    %754 = vmatpush2.xpose.msra.mxu0 0.0
    %755 = vmatprep.subr.mxu0 0.0
    %756 = vmatpush2.xpose.msra.mxu0 0.0
    %757 = vmatprep.subr.mxu0 0.0
    %758 = vmatpush2.xpose.msra.mxu0 0.0
    %759 = vmatprep.subr.mxu0 0.0
    %760 = vmatpush2.xpose.msra.mxu0 0.0
    %761 = vmatprep.mubr.f32.mxu0 0.0
    %762 = vmatmul.mubr.f32.gmra.mxu0 %v302
    %v763 = vpop.f32.mrf.mxu0
    %v764 = vadd.f32 0.0, %v763
    %v765 = vpop.f32.mrf.mxu0
    %766 = vmatprep.mubr.f32.mxu0 0.0
    %767 = vmatmul.mubr.f32.gmra.mxu0 %v308
    %v768 = vpop.f32.mrf.mxu0
    %v769 = vadd.f32 0.0, %v768
    %v770 = vpop.f32.mrf.mxu0
    %771 = vdwg.mxu0
    %v772 = vmul.f32 %v764, 0.35355338
    %v773 = vmul.f32 %v769, 0.35355338
    %v774 = vadd.f32 %v772, %v50
    %v775 = vadd.f32 %v773, %v51
    %vm776 = vcmask 130048
    %v777 = vsel %vm776, %v774, -inf
    %778 = vmax.xlane.f32.xlu0 %v777
    %v779 = vpop.xlane.xlu0 %778
    %v780 = vsel %vm776, %v775, -inf
    %781 = vmax.xlane.f32.xlu0 %v780
    %v782 = vpop.xlane.xlu0 %781
    %v783 = vsub.f32 %v774, %v779
    %v784 = vsub.f32 %v775, %v782
    %v785 = vmul.f32 %v783, 1.442695
    %v786 = vpow.pop %v785
    %v787 = vmul.f32 %v784, 1.442695
    %v788 = vpow.pop %v787
    %v789 = vsel %vm776, %v786, 0.0
    %790 = vadd.xlane.f32.xlu0 %v789
    %v791 = vpop.xlane.xlu0 %790
    %v792 = vsel %vm776, %v788, 0.0
    %793 = vadd.xlane.f32.xlu0 %v792
    %v794 = vpop.xlane.xlu0 %793
    %v795 = vrcp.pop %v791
    %v796 = vrcp.pop %v794
    %v797 = vmul.f32 %v786, %v795
    %v798 = vmul.f32 %v788, %v796
    %v800 = vsel %vm776, %v797, 0
    %v803 = vsel %vm776, %v798, 0
    %805 = vmatprep.subr.mxu0 0.0
    %806 = vmatpush1.msra.mxu0 0.0
    %807 = vmatprep.subr.mxu0 0.0
    %808 = vmatpush1.msra.mxu0 0.0
    %809 = vmatprep.subr.mxu0 0.0
    %810 = vmatpush1.msra.mxu0 0.0
    %811 = vmatprep.subr.mxu0 0.0
    %812 = vmatpush1.msra.mxu0 0.0
    %813 = vmatprep.subr.mxu0 0.0
    %814 = vmatpush1.msra.mxu0 0.0
    %815 = vmatprep.subr.mxu0 0.0
    %816 = vmatpush1.msra.mxu0 0.0
    %817 = vmatprep.subr.mxu0 0.0
    %818 = vmatpush1.msra.mxu0 0.0
    %819 = vmatprep.subr.mxu0 0.0
    %820 = vmatpush1.msra.mxu0 0.0
    %821 = vmatprep.subr.mxu0 0.0
    %822 = vmatpush1.msra.mxu0 0.0
    %823 = vmatprep.subr.mxu0 0.0
    %824 = vmatpush1.msra.mxu0 0.0
    %825 = vmatprep.subr.mxu0 0.0
    %826 = vmatpush1.msra.mxu0 0.0
    %827 = vmatprep.subr.mxu0 0.0
    %828 = vmatpush1.msra.mxu0 0.0
    %829 = vmatprep.subr.mxu0 0.0
    %830 = vmatpush1.msra.mxu0 0.0
    %831 = vmatprep.subr.mxu0 0.0
    %832 = vmatpush1.msra.mxu0 0.0
    %833 = vmatprep.subr.mxu0 0.0
    %834 = vmatpush1.msra.mxu0 %v616
    %835 = vmatprep.subr.mxu0 0.0
    %836 = vmatpush1.msra.mxu0 %v610
    %837 = vmatprep.subr.mxu0 0.0
    %838 = vmatpush2.msra.mxu0 0.0
    %839 = vmatprep.subr.mxu0 0.0
    %840 = vmatpush2.msra.mxu0 0.0
    %841 = vmatprep.subr.mxu0 0.0
    %842 = vmatpush2.msra.mxu0 0.0
    %843 = vmatprep.subr.mxu0 0.0
    %844 = vmatpush2.msra.mxu0 0.0
    %845 = vmatprep.subr.mxu0 0.0
    %846 = vmatpush2.msra.mxu0 0.0
    %847 = vmatprep.subr.mxu0 0.0
    %848 = vmatpush2.msra.mxu0 0.0
    %849 = vmatprep.subr.mxu0 0.0
    %850 = vmatpush2.msra.mxu0 0.0
    %851 = vmatprep.subr.mxu0 0.0
    %852 = vmatpush2.msra.mxu0 0.0
    %853 = vmatprep.subr.mxu0 0.0
    %854 = vmatpush2.msra.mxu0 0.0
    %855 = vmatprep.subr.mxu0 0.0
    %856 = vmatpush2.msra.mxu0 0.0
    %857 = vmatprep.subr.mxu0 0.0
    %858 = vmatpush2.msra.mxu0 0.0
    %859 = vmatprep.subr.mxu0 0.0
    %860 = vmatpush2.msra.mxu0 0.0
    %861 = vmatprep.subr.mxu0 0.0
    %862 = vmatpush2.msra.mxu0 0.0
    %863 = vmatprep.subr.mxu0 0.0
    %864 = vmatpush2.msra.mxu0 0.0
    %865 = vmatprep.subr.mxu0 0.0
    %866 = vmatpush2.msra.mxu0 0.0
    %867 = vmatprep.subr.mxu0 0.0
    %868 = vmatpush2.msra.mxu0 0.0
    %869 = vmatprep.mubr.f32.mxu0 0.0
    %870 = vmatmul.mubr.f32.gmra.mxu0 %v800
    %v871 = vpop.f32.mrf.mxu0
    %v872 = vadd.f32 0.0, %v871
    %v873 = vpop.f32.mrf.mxu0
    %874 = vmatprep.mubr.f32.mxu0 0.0
    %875 = vmatmul.mubr.f32.gmra.mxu0 %v803
    %v876 = vpop.f32.mrf.mxu0
    %v877 = vadd.f32 0.0, %v876
    %v878 = vpop.f32.mrf.mxu0
    %879 = vdwg.mxu0
    %880 = vmatprep.subr.mxu0 0.0
    %881 = vmatpush1.xpose.msra.mxu0 0.0
    %882 = vmatprep.subr.mxu0 0.0
    %883 = vmatpush1.xpose.msra.mxu0 0.0
    %884 = vmatprep.subr.mxu0 0.0
    %885 = vmatpush1.xpose.msra.mxu0 0.0
    %886 = vmatprep.subr.mxu0 0.0
    %887 = vmatpush1.xpose.msra.mxu0 0.0
    %888 = vmatprep.subr.mxu0 0.0
    %889 = vmatpush1.xpose.msra.mxu0 0.0
    %890 = vmatprep.subr.mxu0 0.0
    %891 = vmatpush1.xpose.msra.mxu0 0.0
    %892 = vmatprep.subr.mxu0 0.0
    %893 = vmatpush1.xpose.msra.mxu0 0.0
    %894 = vmatprep.subr.mxu0 0.0
    %895 = vmatpush1.xpose.msra.mxu0 0.0
    %896 = vmatprep.subr.mxu0 0.0
    %897 = vmatpush1.xpose.msra.mxu0 0.0
    %898 = vmatprep.subr.mxu0 0.0
    %899 = vmatpush1.xpose.msra.mxu0 0.0
    %900 = vmatprep.subr.mxu0 0.0
    %901 = vmatpush1.xpose.msra.mxu0 0.0
    %902 = vmatprep.subr.mxu0 0.0
    %903 = vmatpush1.xpose.msra.mxu0 0.0
    %904 = vmatprep.subr.mxu0 0.0
    %905 = vmatpush1.xpose.msra.mxu0 0.0
    %906 = vmatprep.subr.mxu0 0.0
    %907 = vmatpush1.xpose.msra.mxu0 0.0
    %908 = vmatprep.subr.mxu0 0.0
    %909 = vmatpush1.xpose.msra.mxu0 %v464
    %910 = vmatprep.subr.mxu0 0.0
    %911 = vmatpush1.xpose.msra.mxu0 %v458
    %912 = vmatprep.subr.mxu0 0.0
    %913 = vmatpush2.xpose.msra.mxu0 0.0
    %914 = vmatprep.subr.mxu0 0.0
    %915 = vmatpush2.xpose.msra.mxu0 0.0
    %916 = vmatprep.subr.mxu0 0.0
    %917 = vmatpush2.xpose.msra.mxu0 0.0
    %918 = vmatprep.subr.mxu0 0.0
    %919 = vmatpush2.xpose.msra.mxu0 0.0
    %920 = vmatprep.subr.mxu0 0.0
    %921 = vmatpush2.xpose.msra.mxu0 0.0
    %922 = vmatprep.subr.mxu0 0.0
    %923 = vmatpush2.xpose.msra.mxu0 0.0
    %924 = vmatprep.subr.mxu0 0.0
    %925 = vmatpush2.xpose.msra.mxu0 0.0
    %926 = vmatprep.subr.mxu0 0.0
    %927 = vmatpush2.xpose.msra.mxu0 0.0
    %928 = vmatprep.subr.mxu0 0.0
    %929 = vmatpush2.xpose.msra.mxu0 0.0
    %930 = vmatprep.subr.mxu0 0.0
    %931 = vmatpush2.xpose.msra.mxu0 0.0
    %932 = vmatprep.subr.mxu0 0.0
    %933 = vmatpush2.xpose.msra.mxu0 0.0
    %934 = vmatprep.subr.mxu0 0.0
    %935 = vmatpush2.xpose.msra.mxu0 0.0
    %936 = vmatprep.subr.mxu0 0.0
    %937 = vmatpush2.xpose.msra.mxu0 0.0
    %938 = vmatprep.subr.mxu0 0.0
    %939 = vmatpush2.xpose.msra.mxu0 0.0
    %940 = vmatprep.subr.mxu0 0.0
    %941 = vmatpush2.xpose.msra.mxu0 0.0
    %942 = vmatprep.subr.mxu0 0.0
    %943 = vmatpush2.xpose.msra.mxu0 0.0
    %944 = vmatprep.mubr.f32.mxu0 0.0
    %945 = vmatmul.mubr.f32.gmra.mxu0 %v304
    %v946 = vpop.f32.mrf.mxu0
    %v947 = vadd.f32 0.0, %v946
    %v948 = vpop.f32.mrf.mxu0
    %949 = vmatprep.mubr.f32.mxu0 0.0
    %950 = vmatmul.mubr.f32.gmra.mxu0 %v310
    %v951 = vpop.f32.mrf.mxu0
    %v952 = vadd.f32 0.0, %v951
    %v953 = vpop.f32.mrf.mxu0
    %954 = vdwg.mxu0
    %v955 = vmul.f32 %v947, 0.35355338
    %v956 = vmul.f32 %v952, 0.35355338
    %v957 = vadd.f32 %v955, %v50
    %v958 = vadd.f32 %v956, %v51
    %v959 = vsel %vm776, %v957, -inf
    %960 = vmax.xlane.f32.xlu0 %v959
    %v961 = vpop.xlane.xlu0 %960
    %v962 = vsel %vm776, %v958, -inf
    %963 = vmax.xlane.f32.xlu0 %v962
    %v964 = vpop.xlane.xlu0 %963
    %v965 = vsub.f32 %v957, %v961
    %v966 = vsub.f32 %v958, %v964
    %v967 = vmul.f32 %v965, 1.442695
    %v968 = vpow.pop %v967
    %v969 = vmul.f32 %v966, 1.442695
    %v970 = vpow.pop %v969
    %v971 = vsel %vm776, %v968, 0.0
    %972 = vadd.xlane.f32.xlu0 %v971
    %v973 = vpop.xlane.xlu0 %972
    %v974 = vsel %vm776, %v970, 0.0
    %975 = vadd.xlane.f32.xlu0 %v974
    %v976 = vpop.xlane.xlu0 %975
    %v977 = vrcp.pop %v973
    %v978 = vrcp.pop %v976
    %v979 = vmul.f32 %v968, %v977
    %v980 = vmul.f32 %v970, %v978
    %v982 = vsel %vm776, %v979, 0
    %v985 = vsel %vm776, %v980, 0
    %987 = vmatprep.subr.mxu0 0.0
    %988 = vmatpush1.msra.mxu0 0.0
    %989 = vmatprep.subr.mxu0 0.0
    %990 = vmatpush1.msra.mxu0 0.0
    %991 = vmatprep.subr.mxu0 0.0
    %992 = vmatpush1.msra.mxu0 0.0
    %993 = vmatprep.subr.mxu0 0.0
    %994 = vmatpush1.msra.mxu0 0.0
    %995 = vmatprep.subr.mxu0 0.0
    %996 = vmatpush1.msra.mxu0 0.0
    %997 = vmatprep.subr.mxu0 0.0
    %998 = vmatpush1.msra.mxu0 0.0
    %999 = vmatprep.subr.mxu0 0.0
    %1000 = vmatpush1.msra.mxu0 0.0
    %1001 = vmatprep.subr.mxu0 0.0
    %1002 = vmatpush1.msra.mxu0 0.0
    %1003 = vmatprep.subr.mxu0 0.0
    %1004 = vmatpush1.msra.mxu0 0.0
    %1005 = vmatprep.subr.mxu0 0.0
    %1006 = vmatpush1.msra.mxu0 0.0
    %1007 = vmatprep.subr.mxu0 0.0
    %1008 = vmatpush1.msra.mxu0 0.0
    %1009 = vmatprep.subr.mxu0 0.0
    %1010 = vmatpush1.msra.mxu0 0.0
    %1011 = vmatprep.subr.mxu0 0.0
    %1012 = vmatpush1.msra.mxu0 0.0
    %1013 = vmatprep.subr.mxu0 0.0
    %1014 = vmatpush1.msra.mxu0 0.0
    %1015 = vmatprep.subr.mxu0 0.0
    %1016 = vmatpush1.msra.mxu0 %v618
    %1017 = vmatprep.subr.mxu0 0.0
    %1018 = vmatpush1.msra.mxu0 %v612
    %1019 = vmatprep.subr.mxu0 0.0
    %1020 = vmatpush2.msra.mxu0 0.0
    %1021 = vmatprep.subr.mxu0 0.0
    %1022 = vmatpush2.msra.mxu0 0.0
    %1023 = vmatprep.subr.mxu0 0.0
    %1024 = vmatpush2.msra.mxu0 0.0
    %1025 = vmatprep.subr.mxu0 0.0
    %1026 = vmatpush2.msra.mxu0 0.0
    %1027 = vmatprep.subr.mxu0 0.0
    %1028 = vmatpush2.msra.mxu0 0.0
    %1029 = vmatprep.subr.mxu0 0.0
    %1030 = vmatpush2.msra.mxu0 0.0
    %1031 = vmatprep.subr.mxu0 0.0
    %1032 = vmatpush2.msra.mxu0 0.0
    %1033 = vmatprep.subr.mxu0 0.0
    %1034 = vmatpush2.msra.mxu0 0.0
    %1035 = vmatprep.subr.mxu0 0.0
    %1036 = vmatpush2.msra.mxu0 0.0
    %1037 = vmatprep.subr.mxu0 0.0
    %1038 = vmatpush2.msra.mxu0 0.0
    %1039 = vmatprep.subr.mxu0 0.0
    %1040 = vmatpush2.msra.mxu0 0.0
    %1041 = vmatprep.subr.mxu0 0.0
    %1042 = vmatpush2.msra.mxu0 0.0
    %1043 = vmatprep.subr.mxu0 0.0
    %1044 = vmatpush2.msra.mxu0 0.0
    %1045 = vmatprep.subr.mxu0 0.0
    %1046 = vmatpush2.msra.mxu0 0.0
    %1047 = vmatprep.subr.mxu0 0.0
    %1048 = vmatpush2.msra.mxu0 0.0
    %1049 = vmatprep.subr.mxu0 0.0
    %1050 = vmatpush2.msra.mxu0 0.0
    %1051 = vmatprep.mubr.f32.mxu0 0.0
    %1052 = vmatmul.mubr.f32.gmra.mxu0 %v982
    %v1053 = vpop.f32.mrf.mxu0
    %v1054 = vadd.f32 0.0, %v1053
    %v1055 = vpop.f32.mrf.mxu0
    %1056 = vmatprep.mubr.f32.mxu0 0.0
    %1057 = vmatmul.mubr.f32.gmra.mxu0 %v985
    %v1058 = vpop.f32.mrf.mxu0
    %v1059 = vadd.f32 0.0, %v1058
    %v1060 = vpop.f32.mrf.mxu0
    %1061 = vdwg.mxu0
    %1062 = vmatprep.subr.mxu0 0.0
    %1063 = vmatpush1.msra.mxu0 %v83
    %1064 = vmatprep.subr.mxu0 0.0
    %1065 = vmatpush1.msra.mxu0 %v82
    %1066 = vmatprep.subr.mxu0 0.0
    %1067 = vmatpush1.msra.mxu0 %v81
    %1068 = vmatprep.subr.mxu0 0.0
    %1069 = vmatpush1.msra.mxu0 %v80
    %1070 = vmatprep.subr.mxu0 0.0
    %1071 = vmatpush1.msra.mxu0 %v79
    %1072 = vmatprep.subr.mxu0 0.0
    %1073 = vmatpush1.msra.mxu0 %v78
    %1074 = vmatprep.subr.mxu0 0.0
    %1075 = vmatpush1.msra.mxu0 %v77
    %1076 = vmatprep.subr.mxu0 0.0
    %1077 = vmatpush1.msra.mxu0 %v76
    %1078 = vmatprep.subr.mxu0 0.0
    %1079 = vmatpush1.msra.mxu0 %v75
    %1080 = vmatprep.subr.mxu0 0.0
    %1081 = vmatpush1.msra.mxu0 %v74
    %1082 = vmatprep.subr.mxu0 0.0
    %1083 = vmatpush1.msra.mxu0 %v73
    %1084 = vmatprep.subr.mxu0 0.0
    %1085 = vmatpush1.msra.mxu0 %v72
    %1086 = vmatprep.subr.mxu0 0.0
    %1087 = vmatpush1.msra.mxu0 %v71
    %1088 = vmatprep.subr.mxu0 0.0
    %1089 = vmatpush1.msra.mxu0 %v70
    %1090 = vmatprep.subr.mxu0 0.0
    %1091 = vmatpush1.msra.mxu0 %v69
    %1092 = vmatprep.subr.mxu0 0.0
    %1093 = vmatpush1.msra.mxu0 %v68
    %1094 = vmatprep.subr.mxu0 0.0
    %1095 = vmatpush2.msra.mxu0 0.0
    %1096 = vmatprep.subr.mxu0 0.0
    %1097 = vmatpush2.msra.mxu0 0.0
    %1098 = vmatprep.subr.mxu0 0.0
    %1099 = vmatpush2.msra.mxu0 0.0
    %1100 = vmatprep.subr.mxu0 0.0
    %1101 = vmatpush2.msra.mxu0 0.0
    %1102 = vmatprep.subr.mxu0 0.0
    %1103 = vmatpush2.msra.mxu0 0.0
    %1104 = vmatprep.subr.mxu0 0.0
    %1105 = vmatpush2.msra.mxu0 0.0
    %1106 = vmatprep.subr.mxu0 0.0
    %1107 = vmatpush2.msra.mxu0 0.0
    %1108 = vmatprep.subr.mxu0 0.0
    %1109 = vmatpush2.msra.mxu0 0.0
    %1110 = vmatprep.subr.mxu0 0.0
    %1111 = vmatpush2.msra.mxu0 0.0
    %1112 = vmatprep.subr.mxu0 0.0
    %1113 = vmatpush2.msra.mxu0 0.0
    %1114 = vmatprep.subr.mxu0 0.0
    %1115 = vmatpush2.msra.mxu0 0.0
    %1116 = vmatprep.subr.mxu0 0.0
    %1117 = vmatpush2.msra.mxu0 0.0
    %1118 = vmatprep.subr.mxu0 0.0
    %1119 = vmatpush2.msra.mxu0 0.0
    %1120 = vmatprep.subr.mxu0 0.0
    %1121 = vmatpush2.msra.mxu0 0.0
    %1122 = vmatprep.subr.mxu0 0.0
    %1123 = vmatpush2.msra.mxu0 0.0
    %1124 = vmatprep.subr.mxu0 0.0
    %1125 = vmatpush2.msra.mxu0 0.0
    %1126 = vmatprep.mubr.f32.mxu0 0.0
    %1127 = vmatmul.mubr.f32.gmra.mxu0 %v1054
    %v1128 = vpop.f32.mrf.mxu0
    %v1129 = vadd.f32 0.0, %v1128
    %v1130 = vpop.f32.mrf.mxu0
    %1131 = vmatprep.mubr.f32.mxu0 0.0
    %1132 = vmatmul.mubr.f32.gmra.mxu0 %v1059
    %v1133 = vpop.f32.mrf.mxu0
    %v1134 = vadd.f32 0.0, %v1133
    %v1135 = vpop.f32.mrf.mxu0
    %1136 = vdwg.mxu0
    %1137 = vmatprep.subr.mxu0 0.0
    %1138 = vmatpush1.msra.mxu0 %v67
    %1139 = vmatprep.subr.mxu0 0.0
    %1140 = vmatpush1.msra.mxu0 %v66
    %1141 = vmatprep.subr.mxu0 0.0
    %1142 = vmatpush1.msra.mxu0 %v65
    %1143 = vmatprep.subr.mxu0 0.0
    %1144 = vmatpush1.msra.mxu0 %v64
    %1145 = vmatprep.subr.mxu0 0.0
    %1146 = vmatpush1.msra.mxu0 %v63
    %1147 = vmatprep.subr.mxu0 0.0
    %1148 = vmatpush1.msra.mxu0 %v62
    %1149 = vmatprep.subr.mxu0 0.0
    %1150 = vmatpush1.msra.mxu0 %v61
    %1151 = vmatprep.subr.mxu0 0.0
    %1152 = vmatpush1.msra.mxu0 %v60
    %1153 = vmatprep.subr.mxu0 0.0
    %1154 = vmatpush1.msra.mxu0 %v59
    %1155 = vmatprep.subr.mxu0 0.0
    %1156 = vmatpush1.msra.mxu0 %v58
    %1157 = vmatprep.subr.mxu0 0.0
    %1158 = vmatpush1.msra.mxu0 %v57
    %1159 = vmatprep.subr.mxu0 0.0
    %1160 = vmatpush1.msra.mxu0 %v56
    %1161 = vmatprep.subr.mxu0 0.0
    %1162 = vmatpush1.msra.mxu0 %v55
    %1163 = vmatprep.subr.mxu0 0.0
    %1164 = vmatpush1.msra.mxu0 %v54
    %1165 = vmatprep.subr.mxu0 0.0
    %1166 = vmatpush1.msra.mxu0 %v53
    %1167 = vmatprep.subr.mxu0 0.0
    %1168 = vmatpush1.msra.mxu0 %v52
    %1169 = vmatprep.subr.mxu0 0.0
    %1170 = vmatpush2.msra.mxu0 0.0
    %1171 = vmatprep.subr.mxu0 0.0
    %1172 = vmatpush2.msra.mxu0 0.0
    %1173 = vmatprep.subr.mxu0 0.0
    %1174 = vmatpush2.msra.mxu0 0.0
    %1175 = vmatprep.subr.mxu0 0.0
    %1176 = vmatpush2.msra.mxu0 0.0
    %1177 = vmatprep.subr.mxu0 0.0
    %1178 = vmatpush2.msra.mxu0 0.0
    %1179 = vmatprep.subr.mxu0 0.0
    %1180 = vmatpush2.msra.mxu0 0.0
    %1181 = vmatprep.subr.mxu0 0.0
    %1182 = vmatpush2.msra.mxu0 0.0
    %1183 = vmatprep.subr.mxu0 0.0
    %1184 = vmatpush2.msra.mxu0 0.0
    %1185 = vmatprep.subr.mxu0 0.0
    %1186 = vmatpush2.msra.mxu0 0.0
    %1187 = vmatprep.subr.mxu0 0.0
    %1188 = vmatpush2.msra.mxu0 0.0
    %1189 = vmatprep.subr.mxu0 0.0
    %1190 = vmatpush2.msra.mxu0 0.0
    %1191 = vmatprep.subr.mxu0 0.0
    %1192 = vmatpush2.msra.mxu0 0.0
    %1193 = vmatprep.subr.mxu0 0.0
    %1194 = vmatpush2.msra.mxu0 0.0
    %1195 = vmatprep.subr.mxu0 0.0
    %1196 = vmatpush2.msra.mxu0 0.0
    %1197 = vmatprep.subr.mxu0 0.0
    %1198 = vmatpush2.msra.mxu0 0.0
    %1199 = vmatprep.subr.mxu0 0.0
    %1200 = vmatpush2.msra.mxu0 0.0
    %1201 = vmatprep.mubr.f32.mxu0 0.0
    %1202 = vmatmul.mubr.f32.gmra.mxu0 %v872
    %v1203 = vpop.f32.mrf.mxu0
    %v1204 = vadd.f32 %v1129, %v1203
    %v1205 = vpop.f32.mrf.mxu0
    %1206 = vmatprep.mubr.f32.mxu0 0.0
    %1207 = vmatmul.mubr.f32.gmra.mxu0 %v877
    %v1208 = vpop.f32.mrf.mxu0
    %v1209 = vadd.f32 %v1134, %v1208
    %v1210 = vpop.f32.mrf.mxu0
    %1211 = vdwg.mxu0
    %1212 = vmatprep.subr.mxu0 0.0
    %1213 = vmatpush1.xpose.msra.mxu0 0.0
    %1214 = vmatprep.subr.mxu0 0.0
    %1215 = vmatpush1.xpose.msra.mxu0 0.0
    %1216 = vmatprep.subr.mxu0 0.0
    %1217 = vmatpush1.xpose.msra.mxu0 0.0
    %1218 = vmatprep.subr.mxu0 0.0
    %1219 = vmatpush1.xpose.msra.mxu0 0.0
    %1220 = vmatprep.subr.mxu0 0.0
    %1221 = vmatpush1.xpose.msra.mxu0 0.0
    %1222 = vmatprep.subr.mxu0 0.0
    %1223 = vmatpush1.xpose.msra.mxu0 0.0
    %1224 = vmatprep.subr.mxu0 0.0
    %1225 = vmatpush1.xpose.msra.mxu0 0.0
    %1226 = vmatprep.subr.mxu0 0.0
    %1227 = vmatpush1.xpose.msra.mxu0 0.0
    %1228 = vmatprep.subr.mxu0 0.0
    %1229 = vmatpush1.xpose.msra.mxu0 0.0
    %1230 = vmatprep.subr.mxu0 0.0
    %1231 = vmatpush1.xpose.msra.mxu0 0.0
    %1232 = vmatprep.subr.mxu0 0.0
    %1233 = vmatpush1.xpose.msra.mxu0 0.0
    %1234 = vmatprep.subr.mxu0 0.0
    %1235 = vmatpush1.xpose.msra.mxu0 0.0
    %1236 = vmatprep.subr.mxu0 0.0
    %1237 = vmatpush1.xpose.msra.mxu0 0.0
    %1238 = vmatprep.subr.mxu0 0.0
    %1239 = vmatpush1.xpose.msra.mxu0 0.0
    %1240 = vmatprep.subr.mxu0 0.0
    %1241 = vmatpush1.xpose.msra.mxu0 %v539
    %1242 = vmatprep.subr.mxu0 0.0
    %1243 = vmatpush1.xpose.msra.mxu0 %v533
    %1244 = vmatprep.subr.mxu0 0.0
    %1245 = vmatpush2.xpose.msra.mxu0 0.0
    %1246 = vmatprep.subr.mxu0 0.0
    %1247 = vmatpush2.xpose.msra.mxu0 0.0
    %1248 = vmatprep.subr.mxu0 0.0
    %1249 = vmatpush2.xpose.msra.mxu0 0.0
    %1250 = vmatprep.subr.mxu0 0.0
    %1251 = vmatpush2.xpose.msra.mxu0 0.0
    %1252 = vmatprep.subr.mxu0 0.0
    %1253 = vmatpush2.xpose.msra.mxu0 0.0
    %1254 = vmatprep.subr.mxu0 0.0
    %1255 = vmatpush2.xpose.msra.mxu0 0.0
    %1256 = vmatprep.subr.mxu0 0.0
    %1257 = vmatpush2.xpose.msra.mxu0 0.0
    %1258 = vmatprep.subr.mxu0 0.0
    %1259 = vmatpush2.xpose.msra.mxu0 0.0
    %1260 = vmatprep.subr.mxu0 0.0
    %1261 = vmatpush2.xpose.msra.mxu0 0.0
    %1262 = vmatprep.subr.mxu0 0.0
    %1263 = vmatpush2.xpose.msra.mxu0 0.0
    %1264 = vmatprep.subr.mxu0 0.0
    %1265 = vmatpush2.xpose.msra.mxu0 0.0
    %1266 = vmatprep.subr.mxu0 0.0
    %1267 = vmatpush2.xpose.msra.mxu0 0.0
    %1268 = vmatprep.subr.mxu0 0.0
    %1269 = vmatpush2.xpose.msra.mxu0 0.0
    %1270 = vmatprep.subr.mxu0 0.0
    %1271 = vmatpush2.xpose.msra.mxu0 0.0
    %1272 = vmatprep.subr.mxu0 0.0
    %1273 = vmatpush2.xpose.msra.mxu0 0.0
    %1274 = vmatprep.subr.mxu0 0.0
    %1275 = vmatpush2.xpose.msra.mxu0 0.0
    %1276 = vmatprep.mubr.f32.mxu0 0.0
    %1277 = vmatmul.mubr.f32.gmra.mxu0 %v379
    %v1278 = vpop.f32.mrf.mxu0
    %v1279 = vadd.f32 0.0, %v1278
    %v1280 = vpop.f32.mrf.mxu0
    %1281 = vmatprep.mubr.f32.mxu0 0.0
    %1282 = vmatmul.mubr.f32.gmra.mxu0 %v385
    %v1283 = vpop.f32.mrf.mxu0
    %v1284 = vadd.f32 0.0, %v1283
    %v1285 = vpop.f32.mrf.mxu0
    %1286 = vdwg.mxu0
    %v1287 = vmul.f32 %v1279, 0.35355338
    %v1288 = vmul.f32 %v1284, 0.35355338
    %v1289 = vadd.f32 %v1287, %v50
    %v1290 = vadd.f32 %v1288, %v51
    %v1291 = vsel %vm776, %v1289, -inf
    %1292 = vmax.xlane.f32.xlu0 %v1291
    %v1293 = vpop.xlane.xlu0 %1292
    %v1294 = vsel %vm776, %v1290, -inf
    %1295 = vmax.xlane.f32.xlu0 %v1294
    %v1296 = vpop.xlane.xlu0 %1295
    %v1297 = vsub.f32 %v1289, %v1293
    %v1298 = vsub.f32 %v1290, %v1296
    %v1299 = vmul.f32 %v1297, 1.442695
    %v1300 = vpow.pop %v1299
    %v1301 = vmul.f32 %v1298, 1.442695
    %v1302 = vpow.pop %v1301
    %v1303 = vsel %vm776, %v1300, 0.0
    %1304 = vadd.xlane.f32.xlu0 %v1303
    %v1305 = vpop.xlane.xlu0 %1304
    %v1306 = vsel %vm776, %v1302, 0.0
    %1307 = vadd.xlane.f32.xlu0 %v1306
    %v1308 = vpop.xlane.xlu0 %1307
    %v1309 = vrcp.pop %v1305
    %v1310 = vrcp.pop %v1308
    %v1311 = vmul.f32 %v1300, %v1309
    %v1312 = vmul.f32 %v1302, %v1310
    %v1314 = vsel %vm776, %v1311, 0
    %v1317 = vsel %vm776, %v1312, 0
    %1319 = vmatprep.subr.mxu0 0.0
    %1320 = vmatpush1.msra.mxu0 0.0
    %1321 = vmatprep.subr.mxu0 0.0
    %1322 = vmatpush1.msra.mxu0 0.0
    %1323 = vmatprep.subr.mxu0 0.0
    %1324 = vmatpush1.msra.mxu0 0.0
    %1325 = vmatprep.subr.mxu0 0.0
    %1326 = vmatpush1.msra.mxu0 0.0
    %1327 = vmatprep.subr.mxu0 0.0
    %1328 = vmatpush1.msra.mxu0 0.0
    %1329 = vmatprep.subr.mxu0 0.0
    %1330 = vmatpush1.msra.mxu0 0.0
    %1331 = vmatprep.subr.mxu0 0.0
    %1332 = vmatpush1.msra.mxu0 0.0
    %1333 = vmatprep.subr.mxu0 0.0
    %1334 = vmatpush1.msra.mxu0 0.0
    %1335 = vmatprep.subr.mxu0 0.0
    %1336 = vmatpush1.msra.mxu0 0.0
    %1337 = vmatprep.subr.mxu0 0.0
    %1338 = vmatpush1.msra.mxu0 0.0
    %1339 = vmatprep.subr.mxu0 0.0
    %1340 = vmatpush1.msra.mxu0 0.0
    %1341 = vmatprep.subr.mxu0 0.0
    %1342 = vmatpush1.msra.mxu0 0.0
    %1343 = vmatprep.subr.mxu0 0.0
    %1344 = vmatpush1.msra.mxu0 0.0
    %1345 = vmatprep.subr.mxu0 0.0
    %1346 = vmatpush1.msra.mxu0 0.0
    %1347 = vmatprep.subr.mxu0 0.0
    %1348 = vmatpush1.msra.mxu0 %v693
    %1349 = vmatprep.subr.mxu0 0.0
    %1350 = vmatpush1.msra.mxu0 %v687
    %1351 = vmatprep.subr.mxu0 0.0
    %1352 = vmatpush2.msra.mxu0 0.0
    %1353 = vmatprep.subr.mxu0 0.0
    %1354 = vmatpush2.msra.mxu0 0.0
    %1355 = vmatprep.subr.mxu0 0.0
    %1356 = vmatpush2.msra.mxu0 0.0
    %1357 = vmatprep.subr.mxu0 0.0
    %1358 = vmatpush2.msra.mxu0 0.0
    %1359 = vmatprep.subr.mxu0 0.0
    %1360 = vmatpush2.msra.mxu0 0.0
    %1361 = vmatprep.subr.mxu0 0.0
    %1362 = vmatpush2.msra.mxu0 0.0
    %1363 = vmatprep.subr.mxu0 0.0
    %1364 = vmatpush2.msra.mxu0 0.0
    %1365 = vmatprep.subr.mxu0 0.0
    %1366 = vmatpush2.msra.mxu0 0.0
    %1367 = vmatprep.subr.mxu0 0.0
    %1368 = vmatpush2.msra.mxu0 0.0
    %1369 = vmatprep.subr.mxu0 0.0
    %1370 = vmatpush2.msra.mxu0 0.0
    %1371 = vmatprep.subr.mxu0 0.0
    %1372 = vmatpush2.msra.mxu0 0.0
    %1373 = vmatprep.subr.mxu0 0.0
    %1374 = vmatpush2.msra.mxu0 0.0
    %1375 = vmatprep.subr.mxu0 0.0
    %1376 = vmatpush2.msra.mxu0 0.0
    %1377 = vmatprep.subr.mxu0 0.0
    %1378 = vmatpush2.msra.mxu0 0.0
    %1379 = vmatprep.subr.mxu0 0.0
    %1380 = vmatpush2.msra.mxu0 0.0
    %1381 = vmatprep.subr.mxu0 0.0
    %1382 = vmatpush2.msra.mxu0 0.0
    %1383 = vmatprep.mubr.f32.mxu0 0.0
    %1384 = vmatmul.mubr.f32.gmra.mxu0 %v1314
    %v1385 = vpop.f32.mrf.mxu0
    %v1386 = vadd.f32 0.0, %v1385
    %v1387 = vpop.f32.mrf.mxu0
    %1388 = vmatprep.mubr.f32.mxu0 0.0
    %1389 = vmatmul.mubr.f32.gmra.mxu0 %v1317
    %v1390 = vpop.f32.mrf.mxu0
    %v1391 = vadd.f32 0.0, %v1390
    %v1392 = vpop.f32.mrf.mxu0
    %1393 = vdwg.mxu0
    %1394 = vmatprep.subr.mxu0 0.0
    %1395 = vmatpush1.msra.mxu0 %v99
    %1396 = vmatprep.subr.mxu0 0.0
    %1397 = vmatpush1.msra.mxu0 %v98
    %1398 = vmatprep.subr.mxu0 0.0
    %1399 = vmatpush1.msra.mxu0 %v97
    %1400 = vmatprep.subr.mxu0 0.0
    %1401 = vmatpush1.msra.mxu0 %v96
    %1402 = vmatprep.subr.mxu0 0.0
    %1403 = vmatpush1.msra.mxu0 %v95
    %1404 = vmatprep.subr.mxu0 0.0
    %1405 = vmatpush1.msra.mxu0 %v94
    %1406 = vmatprep.subr.mxu0 0.0
    %1407 = vmatpush1.msra.mxu0 %v93
    %1408 = vmatprep.subr.mxu0 0.0
    %1409 = vmatpush1.msra.mxu0 %v92
    %1410 = vmatprep.subr.mxu0 0.0
    %1411 = vmatpush1.msra.mxu0 %v91
    %1412 = vmatprep.subr.mxu0 0.0
    %1413 = vmatpush1.msra.mxu0 %v90
    %1414 = vmatprep.subr.mxu0 0.0
    %1415 = vmatpush1.msra.mxu0 %v89
    %1416 = vmatprep.subr.mxu0 0.0
    %1417 = vmatpush1.msra.mxu0 %v88
    %1418 = vmatprep.subr.mxu0 0.0
    %1419 = vmatpush1.msra.mxu0 %v87
    %1420 = vmatprep.subr.mxu0 0.0
    %1421 = vmatpush1.msra.mxu0 %v86
    %1422 = vmatprep.subr.mxu0 0.0
    %1423 = vmatpush1.msra.mxu0 %v85
    %1424 = vmatprep.subr.mxu0 0.0
    %1425 = vmatpush1.msra.mxu0 %v84
    %1426 = vmatprep.subr.mxu0 0.0
    %1427 = vmatpush2.msra.mxu0 0.0
    %1428 = vmatprep.subr.mxu0 0.0
    %1429 = vmatpush2.msra.mxu0 0.0
    %1430 = vmatprep.subr.mxu0 0.0
    %1431 = vmatpush2.msra.mxu0 0.0
    %1432 = vmatprep.subr.mxu0 0.0
    %1433 = vmatpush2.msra.mxu0 0.0
    %1434 = vmatprep.subr.mxu0 0.0
    %1435 = vmatpush2.msra.mxu0 0.0
    %1436 = vmatprep.subr.mxu0 0.0
    %1437 = vmatpush2.msra.mxu0 0.0
    %1438 = vmatprep.subr.mxu0 0.0
    %1439 = vmatpush2.msra.mxu0 0.0
    %1440 = vmatprep.subr.mxu0 0.0
    %1441 = vmatpush2.msra.mxu0 0.0
    %1442 = vmatprep.subr.mxu0 0.0
    %1443 = vmatpush2.msra.mxu0 0.0
    %1444 = vmatprep.subr.mxu0 0.0
    %1445 = vmatpush2.msra.mxu0 0.0
    %1446 = vmatprep.subr.mxu0 0.0
    %1447 = vmatpush2.msra.mxu0 0.0
    %1448 = vmatprep.subr.mxu0 0.0
    %1449 = vmatpush2.msra.mxu0 0.0
    %1450 = vmatprep.subr.mxu0 0.0
    %1451 = vmatpush2.msra.mxu0 0.0
    %1452 = vmatprep.subr.mxu0 0.0
    %1453 = vmatpush2.msra.mxu0 0.0
    %1454 = vmatprep.subr.mxu0 0.0
    %1455 = vmatpush2.msra.mxu0 0.0
    %1456 = vmatprep.subr.mxu0 0.0
    %1457 = vmatpush2.msra.mxu0 0.0
    %1458 = vmatprep.mubr.f32.mxu0 0.0
    %1459 = vmatmul.mubr.f32.gmra.mxu0 %v1386
    %v1460 = vpop.f32.mrf.mxu0
    %v1461 = vadd.f32 0.0, %v1460
    %v1462 = vpop.f32.mrf.mxu0
    %1463 = vmatprep.mubr.f32.mxu0 0.0
    %1464 = vmatmul.mubr.f32.gmra.mxu0 %v1391
    %v1465 = vpop.f32.mrf.mxu0
    %v1466 = vadd.f32 0.0, %v1465
    %v1467 = vpop.f32.mrf.mxu0
    %1468 = vdwg.mxu0
    %v1469 = vadd.f32 %v1204, %v1461
    %v1470 = vadd.f32 %v1209, %v1466
    %1471 = vmatprep.subr.mxu0 0.0
    %1472 = vmatpush1.xpose.msra.mxu0 0.0
    %1473 = vmatprep.subr.mxu0 0.0
    %1474 = vmatpush1.xpose.msra.mxu0 0.0
    %1475 = vmatprep.subr.mxu0 0.0
    %1476 = vmatpush1.xpose.msra.mxu0 0.0
    %1477 = vmatprep.subr.mxu0 0.0
    %1478 = vmatpush1.xpose.msra.mxu0 0.0
    %1479 = vmatprep.subr.mxu0 0.0
    %1480 = vmatpush1.xpose.msra.mxu0 0.0
    %1481 = vmatprep.subr.mxu0 0.0
    %1482 = vmatpush1.xpose.msra.mxu0 0.0
    %1483 = vmatprep.subr.mxu0 0.0
    %1484 = vmatpush1.xpose.msra.mxu0 0.0
    %1485 = vmatprep.subr.mxu0 0.0
    %1486 = vmatpush1.xpose.msra.mxu0 0.0
    %1487 = vmatprep.subr.mxu0 0.0
    %1488 = vmatpush1.xpose.msra.mxu0 0.0
    %1489 = vmatprep.subr.mxu0 0.0
    %1490 = vmatpush1.xpose.msra.mxu0 0.0
    %1491 = vmatprep.subr.mxu0 0.0
    %1492 = vmatpush1.xpose.msra.mxu0 0.0
    %1493 = vmatprep.subr.mxu0 0.0
    %1494 = vmatpush1.xpose.msra.mxu0 0.0
    %1495 = vmatprep.subr.mxu0 0.0
    %1496 = vmatpush1.xpose.msra.mxu0 0.0
    %1497 = vmatprep.subr.mxu0 0.0
    %1498 = vmatpush1.xpose.msra.mxu0 0.0
    %1499 = vmatprep.subr.mxu0 0.0
    %1500 = vmatpush1.xpose.msra.mxu0 %v541
    %1501 = vmatprep.subr.mxu0 0.0
    %1502 = vmatpush1.xpose.msra.mxu0 %v535
    %1503 = vmatprep.subr.mxu0 0.0
    %1504 = vmatpush2.xpose.msra.mxu0 0.0
    %1505 = vmatprep.subr.mxu0 0.0
    %1506 = vmatpush2.xpose.msra.mxu0 0.0
    %1507 = vmatprep.subr.mxu0 0.0
    %1508 = vmatpush2.xpose.msra.mxu0 0.0
    %1509 = vmatprep.subr.mxu0 0.0
    %1510 = vmatpush2.xpose.msra.mxu0 0.0
    %1511 = vmatprep.subr.mxu0 0.0
    %1512 = vmatpush2.xpose.msra.mxu0 0.0
    %1513 = vmatprep.subr.mxu0 0.0
    %1514 = vmatpush2.xpose.msra.mxu0 0.0
    %1515 = vmatprep.subr.mxu0 0.0
    %1516 = vmatpush2.xpose.msra.mxu0 0.0
    %1517 = vmatprep.subr.mxu0 0.0
    %1518 = vmatpush2.xpose.msra.mxu0 0.0
    %1519 = vmatprep.subr.mxu0 0.0
    %1520 = vmatpush2.xpose.msra.mxu0 0.0
    %1521 = vmatprep.subr.mxu0 0.0
    %1522 = vmatpush2.xpose.msra.mxu0 0.0
    %1523 = vmatprep.subr.mxu0 0.0
    %1524 = vmatpush2.xpose.msra.mxu0 0.0
    %1525 = vmatprep.subr.mxu0 0.0
    %1526 = vmatpush2.xpose.msra.mxu0 0.0
    %1527 = vmatprep.subr.mxu0 0.0
    %1528 = vmatpush2.xpose.msra.mxu0 0.0
    %1529 = vmatprep.subr.mxu0 0.0
    %1530 = vmatpush2.xpose.msra.mxu0 0.0
    %1531 = vmatprep.subr.mxu0 0.0
    %1532 = vmatpush2.xpose.msra.mxu0 0.0
    %1533 = vmatprep.subr.mxu0 0.0
    %1534 = vmatpush2.xpose.msra.mxu0 0.0
    %1535 = vmatprep.mubr.f32.mxu0 0.0
    %1536 = vmatmul.mubr.f32.gmra.mxu0 %v381
    %v1537 = vpop.f32.mrf.mxu0
    %v1538 = vadd.f32 0.0, %v1537
    %v1539 = vpop.f32.mrf.mxu0
    %1540 = vmatprep.mubr.f32.mxu0 0.0
    %1541 = vmatmul.mubr.f32.gmra.mxu0 %v387
    %v1542 = vpop.f32.mrf.mxu0
    %v1543 = vadd.f32 0.0, %v1542
    %v1544 = vpop.f32.mrf.mxu0
    %1545 = vdwg.mxu0
    %v1546 = vmul.f32 %v1538, 0.35355338
    %v1547 = vmul.f32 %v1543, 0.35355338
    %v1548 = vadd.f32 %v1546, %v50
    %v1549 = vadd.f32 %v1547, %v51
    %v1550 = vsel %vm776, %v1548, -inf
    %1551 = vmax.xlane.f32.xlu0 %v1550
    %v1552 = vpop.xlane.xlu0 %1551
    %v1553 = vsel %vm776, %v1549, -inf
    %1554 = vmax.xlane.f32.xlu0 %v1553
    %v1555 = vpop.xlane.xlu0 %1554
    %v1556 = vsub.f32 %v1548, %v1552
    %v1557 = vsub.f32 %v1549, %v1555
    %v1558 = vmul.f32 %v1556, 1.442695
    %v1559 = vpow.pop %v1558
    %v1560 = vmul.f32 %v1557, 1.442695
    %v1561 = vpow.pop %v1560
    %v1562 = vsel %vm776, %v1559, 0.0
    %1563 = vadd.xlane.f32.xlu0 %v1562
    %v1564 = vpop.xlane.xlu0 %1563
    %v1565 = vsel %vm776, %v1561, 0.0
    %1566 = vadd.xlane.f32.xlu0 %v1565
    %v1567 = vpop.xlane.xlu0 %1566
    %v1568 = vrcp.pop %v1564
    %v1569 = vrcp.pop %v1567
    %v1570 = vmul.f32 %v1559, %v1568
    %v1571 = vmul.f32 %v1561, %v1569
    %v1573 = vsel %vm776, %v1570, 0
    %v1576 = vsel %vm776, %v1571, 0
    %1578 = vmatprep.subr.mxu0 0.0
    %1579 = vmatpush1.msra.mxu0 0.0
    %1580 = vmatprep.subr.mxu0 0.0
    %1581 = vmatpush1.msra.mxu0 0.0
    %1582 = vmatprep.subr.mxu0 0.0
    %1583 = vmatpush1.msra.mxu0 0.0
    %1584 = vmatprep.subr.mxu0 0.0
    %1585 = vmatpush1.msra.mxu0 0.0
    %1586 = vmatprep.subr.mxu0 0.0
    %1587 = vmatpush1.msra.mxu0 0.0
    %1588 = vmatprep.subr.mxu0 0.0
    %1589 = vmatpush1.msra.mxu0 0.0
    %1590 = vmatprep.subr.mxu0 0.0
    %1591 = vmatpush1.msra.mxu0 0.0
    %1592 = vmatprep.subr.mxu0 0.0
    %1593 = vmatpush1.msra.mxu0 0.0
    %1594 = vmatprep.subr.mxu0 0.0
    %1595 = vmatpush1.msra.mxu0 0.0
    %1596 = vmatprep.subr.mxu0 0.0
    %1597 = vmatpush1.msra.mxu0 0.0
    %1598 = vmatprep.subr.mxu0 0.0
    %1599 = vmatpush1.msra.mxu0 0.0
    %1600 = vmatprep.subr.mxu0 0.0
    %1601 = vmatpush1.msra.mxu0 0.0
    %1602 = vmatprep.subr.mxu0 0.0
    %1603 = vmatpush1.msra.mxu0 0.0
    %1604 = vmatprep.subr.mxu0 0.0
    %1605 = vmatpush1.msra.mxu0 0.0
    %1606 = vmatprep.subr.mxu0 0.0
    %1607 = vmatpush1.msra.mxu0 %v695
    %1608 = vmatprep.subr.mxu0 0.0
    %1609 = vmatpush1.msra.mxu0 %v689
    %1610 = vmatprep.subr.mxu0 0.0
    %1611 = vmatpush2.msra.mxu0 0.0
    %1612 = vmatprep.subr.mxu0 0.0
    %1613 = vmatpush2.msra.mxu0 0.0
    %1614 = vmatprep.subr.mxu0 0.0
    %1615 = vmatpush2.msra.mxu0 0.0
    %1616 = vmatprep.subr.mxu0 0.0
    %1617 = vmatpush2.msra.mxu0 0.0
    %1618 = vmatprep.subr.mxu0 0.0
    %1619 = vmatpush2.msra.mxu0 0.0
    %1620 = vmatprep.subr.mxu0 0.0
    %1621 = vmatpush2.msra.mxu0 0.0
    %1622 = vmatprep.subr.mxu0 0.0
    %1623 = vmatpush2.msra.mxu0 0.0
    %1624 = vmatprep.subr.mxu0 0.0
    %1625 = vmatpush2.msra.mxu0 0.0
    %1626 = vmatprep.subr.mxu0 0.0
    %1627 = vmatpush2.msra.mxu0 0.0
    %1628 = vmatprep.subr.mxu0 0.0
    %1629 = vmatpush2.msra.mxu0 0.0
    %1630 = vmatprep.subr.mxu0 0.0
    %1631 = vmatpush2.msra.mxu0 0.0
    %1632 = vmatprep.subr.mxu0 0.0
    %1633 = vmatpush2.msra.mxu0 0.0
    %1634 = vmatprep.subr.mxu0 0.0
    %1635 = vmatpush2.msra.mxu0 0.0
    %1636 = vmatprep.subr.mxu0 0.0
    %1637 = vmatpush2.msra.mxu0 0.0
    %1638 = vmatprep.subr.mxu0 0.0
    %1639 = vmatpush2.msra.mxu0 0.0
    %1640 = vmatprep.subr.mxu0 0.0
    %1641 = vmatpush2.msra.mxu0 0.0
    %1642 = vmatprep.mubr.f32.mxu0 0.0
    %1643 = vmatmul.mubr.f32.gmra.mxu0 %v1573
    %v1644 = vpop.f32.mrf.mxu0
    %v1645 = vadd.f32 0.0, %v1644
    %v1646 = vpop.f32.mrf.mxu0
    %1647 = vmatprep.mubr.f32.mxu0 0.0
    %1648 = vmatmul.mubr.f32.gmra.mxu0 %v1576
    %v1649 = vpop.f32.mrf.mxu0
    %v1650 = vadd.f32 0.0, %v1649
    %v1651 = vpop.f32.mrf.mxu0
    %1652 = vdwg.mxu0
    %1653 = vmatprep.subr.mxu0 0.0
    %1654 = vmatpush1.msra.mxu0 %v115
    %1655 = vmatprep.subr.mxu0 0.0
    %1656 = vmatpush1.msra.mxu0 %v114
    %1657 = vmatprep.subr.mxu0 0.0
    %1658 = vmatpush1.msra.mxu0 %v113
    %1659 = vmatprep.subr.mxu0 0.0
    %1660 = vmatpush1.msra.mxu0 %v112
    %1661 = vmatprep.subr.mxu0 0.0
    %1662 = vmatpush1.msra.mxu0 %v111
    %1663 = vmatprep.subr.mxu0 0.0
    %1664 = vmatpush1.msra.mxu0 %v110
    %1665 = vmatprep.subr.mxu0 0.0
    %1666 = vmatpush1.msra.mxu0 %v109
    %1667 = vmatprep.subr.mxu0 0.0
    %1668 = vmatpush1.msra.mxu0 %v108
    %1669 = vmatprep.subr.mxu0 0.0
    %1670 = vmatpush1.msra.mxu0 %v107
    %1671 = vmatprep.subr.mxu0 0.0
    %1672 = vmatpush1.msra.mxu0 %v106
    %1673 = vmatprep.subr.mxu0 0.0
    %1674 = vmatpush1.msra.mxu0 %v105
    %1675 = vmatprep.subr.mxu0 0.0
    %1676 = vmatpush1.msra.mxu0 %v104
    %1677 = vmatprep.subr.mxu0 0.0
    %1678 = vmatpush1.msra.mxu0 %v103
    %1679 = vmatprep.subr.mxu0 0.0
    %1680 = vmatpush1.msra.mxu0 %v102
    %1681 = vmatprep.subr.mxu0 0.0
    %1682 = vmatpush1.msra.mxu0 %v101
    %1683 = vmatprep.subr.mxu0 0.0
    %1684 = vmatpush1.msra.mxu0 %v100
    %1685 = vmatprep.subr.mxu0 0.0
    %1686 = vmatpush2.msra.mxu0 0.0
    %1687 = vmatprep.subr.mxu0 0.0
    %1688 = vmatpush2.msra.mxu0 0.0
    %1689 = vmatprep.subr.mxu0 0.0
    %1690 = vmatpush2.msra.mxu0 0.0
    %1691 = vmatprep.subr.mxu0 0.0
    %1692 = vmatpush2.msra.mxu0 0.0
    %1693 = vmatprep.subr.mxu0 0.0
    %1694 = vmatpush2.msra.mxu0 0.0
    %1695 = vmatprep.subr.mxu0 0.0
    %1696 = vmatpush2.msra.mxu0 0.0
    %1697 = vmatprep.subr.mxu0 0.0
    %1698 = vmatpush2.msra.mxu0 0.0
    %1699 = vmatprep.subr.mxu0 0.0
    %1700 = vmatpush2.msra.mxu0 0.0
    %1701 = vmatprep.subr.mxu0 0.0
    %1702 = vmatpush2.msra.mxu0 0.0
    %1703 = vmatprep.subr.mxu0 0.0
    %1704 = vmatpush2.msra.mxu0 0.0
    %1705 = vmatprep.subr.mxu0 0.0
    %1706 = vmatpush2.msra.mxu0 0.0
    %1707 = vmatprep.subr.mxu0 0.0
    %1708 = vmatpush2.msra.mxu0 0.0
    %1709 = vmatprep.subr.mxu0 0.0
    %1710 = vmatpush2.msra.mxu0 0.0
    %1711 = vmatprep.subr.mxu0 0.0
    %1712 = vmatpush2.msra.mxu0 0.0
    %1713 = vmatprep.subr.mxu0 0.0
    %1714 = vmatpush2.msra.mxu0 0.0
    %1715 = vmatprep.subr.mxu0 0.0
    %1716 = vmatpush2.msra.mxu0 0.0
    %1717 = vmatprep.mubr.f32.mxu0 0.0
    %1718 = vmatmul.mubr.f32.gmra.mxu0 %v1645
    %v1719 = vpop.f32.mrf.mxu0
    %v1720 = vadd.f32 0.0, %v1719
    %v1721 = vpop.f32.mrf.mxu0
    %1722 = vmatprep.mubr.f32.mxu0 0.0
    %1723 = vmatmul.mubr.f32.gmra.mxu0 %v1650
    %v1724 = vpop.f32.mrf.mxu0
    %v1725 = vadd.f32 0.0, %v1724
    %v1726 = vpop.f32.mrf.mxu0
    %1727 = vdwg.mxu0
    %v1728 = vadd.f32 %v1469, %v1720
    %v1729 = vadd.f32 %v1470, %v1725
    %v1730 = vld [vmem:[%s5] sm:$0x1]
    %v1732 = vlaneseq
    %v1733 = vshrl.u32 %v1732, 7
    %v1734 = vsub.s32 0, %v1733
    %v1735 = vrot.slane %v1730, %v1734
    %v1737 = vadd.f32 %v1728, %v1735
    %v1738 = vadd.f32 %v1729, %v1735
    %v1739 = vadd.f32 %v48, %v1737
    %v1740 = vadd.f32 %v49, %v1738
    %v1741 = vld [vmem:[%s6] sm:$0x1]
    %v1742 = vld [vmem:[%s7] sm:$0x1]
    %v1743 = vsel %vm228, %v1739, 0.0
    %1744 = vadd.xlane.f32.xlu0 %v1743
    %v1745 = vpop.xlane.xlu0 %1744
    %v1746 = vsel %vm228, %v1740, 0.0
    %1747 = vadd.xlane.f32.xlu0 %v1746
    %v1748 = vpop.xlane.xlu0 %1747
    %v1749 = vrcp.pop 32.0
    %v1750 = vmul.f32 %v1745, %v1749
    %v1751 = vmul.f32 %v1748, %v1749
    %v1752 = vsub.f32 %v1739, %v1750
    %v1753 = vsub.f32 %v1740, %v1751
    %v1754 = vmul.f32 %v1752, %v1752
    %v1755 = vmul.f32 %v1753, %v1753
    %v1756 = vsel %vm228, %v1754, 0.0
    %1757 = vadd.xlane.f32.xlu0 %v1756
    %v1758 = vpop.xlane.xlu0 %1757
    %v1759 = vsel %vm228, %v1755, 0.0
    %1760 = vadd.xlane.f32.xlu0 %v1759
    %v1761 = vpop.xlane.xlu0 %1760
    %v1762 = vmul.f32 %v1758, %v1749
    %v1763 = vmul.f32 %v1761, %v1749
    %v1764 = vadd.f32 %v1762, 1e-05
    %v1765 = vadd.f32 %v1763, 1e-05
    %v1766 = vrsqrt.pop %v1764
    %v1767 = vrsqrt.pop %v1765
    %v1768 = vmul.f32 %v1752, %v1766
    %v1769 = vmul.f32 %v1753, %v1767
    %v1771 = vlaneseq
    %v1772 = vshrl.u32 %v1771, 7
    %v1773 = vsub.s32 0, %v1772
    %v1774 = vrot.slane %v1741, %v1773
    %v1776 = vmul.f32 %v1768, %v1774
    %v1777 = vmul.f32 %v1769, %v1774
    %v1779 = vlaneseq
    %v1780 = vshrl.u32 %v1779, 7
    %v1781 = vsub.s32 0, %v1780
    %v1782 = vrot.slane %v1742, %v1781
    %v1784 = vadd.f32 %v1776, %v1782
    %v1785 = vadd.f32 %v1777, %v1782
    %v1786 = vld [vmem:[%s8] sm:$0xff]
    %v1787 = vld [vmem:[%s8 + $0x8] sm:$0xff]
    %v1788 = vld [vmem:[%s8 + $0x10] sm:$0xff]
    %v1789 = vld [vmem:[%s8 + $0x18] sm:$0xff]
    %v1790 = vld [vmem:[%s9] sm:$0x1]
    %v1792 = vlaneseq
    %v1793 = vshrl.u32 %v1792, 7
    %v1794 = vsub.s32 0, %v1793
    %v1795 = vrot.slane %v1790, %v1794
    %v1798 = vsel %vm228, %v1784, 0
    %v1801 = vsel %vm228, %v1785, 0
    %1803 = vmatprep.subr.mxu0 0.0
    %1804 = vmatpush1.msra.mxu0 0.0
    %1805 = vmatprep.subr.mxu0 0.0
    %1806 = vmatpush1.msra.mxu0 0.0
    %1807 = vmatprep.subr.mxu0 0.0
    %1808 = vmatpush1.msra.mxu0 0.0
    %1809 = vmatprep.subr.mxu0 0.0
    %1810 = vmatpush1.msra.mxu0 0.0
    %1811 = vmatprep.subr.mxu0 0.0
    %1812 = vmatpush1.msra.mxu0 0.0
    %1813 = vmatprep.subr.mxu0 0.0
    %1814 = vmatpush1.msra.mxu0 0.0
    %1815 = vmatprep.subr.mxu0 0.0
    %1816 = vmatpush1.msra.mxu0 0.0
    %1817 = vmatprep.subr.mxu0 0.0
    %1818 = vmatpush1.msra.mxu0 0.0
    %1819 = vmatprep.subr.mxu0 0.0
    %1820 = vmatpush1.msra.mxu0 0.0
    %1821 = vmatprep.subr.mxu0 0.0
    %1822 = vmatpush1.msra.mxu0 0.0
    %1823 = vmatprep.subr.mxu0 0.0
    %1824 = vmatpush1.msra.mxu0 0.0
    %1825 = vmatprep.subr.mxu0 0.0
    %1826 = vmatpush1.msra.mxu0 0.0
    %1827 = vmatprep.subr.mxu0 0.0
    %1828 = vmatpush1.msra.mxu0 %v1789
    %1829 = vmatprep.subr.mxu0 0.0
    %1830 = vmatpush1.msra.mxu0 %v1788
    %1831 = vmatprep.subr.mxu0 0.0
    %1832 = vmatpush1.msra.mxu0 %v1787
    %1833 = vmatprep.subr.mxu0 0.0
    %1834 = vmatpush1.msra.mxu0 %v1786
    %1835 = vmatprep.subr.mxu0 0.0
    %1836 = vmatpush2.msra.mxu0 0.0
    %1837 = vmatprep.subr.mxu0 0.0
    %1838 = vmatpush2.msra.mxu0 0.0
    %1839 = vmatprep.subr.mxu0 0.0
    %1840 = vmatpush2.msra.mxu0 0.0
    %1841 = vmatprep.subr.mxu0 0.0
    %1842 = vmatpush2.msra.mxu0 0.0
    %1843 = vmatprep.subr.mxu0 0.0
    %1844 = vmatpush2.msra.mxu0 0.0
    %1845 = vmatprep.subr.mxu0 0.0
    %1846 = vmatpush2.msra.mxu0 0.0
    %1847 = vmatprep.subr.mxu0 0.0
    %1848 = vmatpush2.msra.mxu0 0.0
    %1849 = vmatprep.subr.mxu0 0.0
    %1850 = vmatpush2.msra.mxu0 0.0
    %1851 = vmatprep.subr.mxu0 0.0
    %1852 = vmatpush2.msra.mxu0 0.0
    %1853 = vmatprep.subr.mxu0 0.0
    %1854 = vmatpush2.msra.mxu0 0.0
    %1855 = vmatprep.subr.mxu0 0.0
    %1856 = vmatpush2.msra.mxu0 0.0
    %1857 = vmatprep.subr.mxu0 0.0
    %1858 = vmatpush2.msra.mxu0 0.0
    %1859 = vmatprep.subr.mxu0 0.0
    %1860 = vmatpush2.msra.mxu0 0.0
    %1861 = vmatprep.subr.mxu0 0.0
    %1862 = vmatpush2.msra.mxu0 0.0
    %1863 = vmatprep.subr.mxu0 0.0
    %1864 = vmatpush2.msra.mxu0 0.0
    %1865 = vmatprep.subr.mxu0 0.0
    %1866 = vmatpush2.msra.mxu0 0.0
    %1867 = vmatprep.mubr.f32.mxu0 0.0
    %1868 = vmatmul.mubr.f32.gmra.mxu0 %v1798
    %v1869 = vpop.f32.mrf.mxu0
    %v1870 = vadd.f32 %v1795, %v1869
    %v1871 = vpop.f32.mrf.mxu0
    %1872 = vmatprep.mubr.f32.mxu0 0.0
    %1873 = vmatmul.mubr.f32.gmra.mxu0 %v1801
    %v1874 = vpop.f32.mrf.mxu0
    %v1875 = vadd.f32 %v1795, %v1874
    %v1876 = vpop.f32.mrf.mxu0
    %1877 = vdwg.mxu0
    %v1878 = vmax.f32 %v1870, 0.0
    %v1879 = vmax.f32 %v1875, 0.0
    %v1880 = vld [vmem:[%s10] sm:$0xff]
    %v1881 = vld [vmem:[%s10 + $0x8] sm:$0xff]
    %v1882 = vld [vmem:[%s10 + $0x10] sm:$0xff]
    %v1883 = vld [vmem:[%s10 + $0x18] sm:$0xff]
    %v1884 = vld [vmem:[%s10 + $0x20] sm:$0xff]
    %v1885 = vld [vmem:[%s10 + $0x28] sm:$0xff]
    %v1886 = vld [vmem:[%s10 + $0x30] sm:$0xff]
    %v1887 = vld [vmem:[%s10 + $0x38] sm:$0xff]
    %v1888 = vld [vmem:[%s10 + $0x40] sm:$0xff]
    %v1889 = vld [vmem:[%s10 + $0x48] sm:$0xff]
    %v1890 = vld [vmem:[%s10 + $0x50] sm:$0xff]
    %v1891 = vld [vmem:[%s10 + $0x58] sm:$0xff]
    %v1892 = vld [vmem:[%s10 + $0x60] sm:$0xff]
    %v1893 = vld [vmem:[%s10 + $0x68] sm:$0xff]
    %v1894 = vld [vmem:[%s10 + $0x70] sm:$0xff]
    %v1895 = vld [vmem:[%s10 + $0x78] sm:$0xff]
    %v1896 = vld [vmem:[%s11] sm:$0x1]
    %v1898 = vlaneseq
    %v1899 = vshrl.u32 %v1898, 7
    %v1900 = vsub.s32 0, %v1899
    %v1901 = vrot.slane %v1896, %v1900
    %1903 = vmatprep.subr.mxu0 0.0
    %1904 = vmatpush1.msra.mxu0 %v1895
    %1905 = vmatprep.subr.mxu0 0.0
    %1906 = vmatpush1.msra.mxu0 %v1894
    %1907 = vmatprep.subr.mxu0 0.0
    %1908 = vmatpush1.msra.mxu0 %v1893
    %1909 = vmatprep.subr.mxu0 0.0
    %1910 = vmatpush1.msra.mxu0 %v1892
    %1911 = vmatprep.subr.mxu0 0.0
    %1912 = vmatpush1.msra.mxu0 %v1891
    %1913 = vmatprep.subr.mxu0 0.0
    %1914 = vmatpush1.msra.mxu0 %v1890
    %1915 = vmatprep.subr.mxu0 0.0
    %1916 = vmatpush1.msra.mxu0 %v1889
    %1917 = vmatprep.subr.mxu0 0.0
    %1918 = vmatpush1.msra.mxu0 %v1888
    %1919 = vmatprep.subr.mxu0 0.0
    %1920 = vmatpush1.msra.mxu0 %v1887
    %1921 = vmatprep.subr.mxu0 0.0
    %1922 = vmatpush1.msra.mxu0 %v1886
    %1923 = vmatprep.subr.mxu0 0.0
    %1924 = vmatpush1.msra.mxu0 %v1885
    %1925 = vmatprep.subr.mxu0 0.0
    %1926 = vmatpush1.msra.mxu0 %v1884
    %1927 = vmatprep.subr.mxu0 0.0
    %1928 = vmatpush1.msra.mxu0 %v1883
    %1929 = vmatprep.subr.mxu0 0.0
    %1930 = vmatpush1.msra.mxu0 %v1882
    %1931 = vmatprep.subr.mxu0 0.0
    %1932 = vmatpush1.msra.mxu0 %v1881
    %1933 = vmatprep.subr.mxu0 0.0
    %1934 = vmatpush1.msra.mxu0 %v1880
    %1935 = vmatprep.subr.mxu0 0.0
    %1936 = vmatpush2.msra.mxu0 0.0
    %1937 = vmatprep.subr.mxu0 0.0
    %1938 = vmatpush2.msra.mxu0 0.0
    %1939 = vmatprep.subr.mxu0 0.0
    %1940 = vmatpush2.msra.mxu0 0.0
    %1941 = vmatprep.subr.mxu0 0.0
    %1942 = vmatpush2.msra.mxu0 0.0
    %1943 = vmatprep.subr.mxu0 0.0
    %1944 = vmatpush2.msra.mxu0 0.0
    %1945 = vmatprep.subr.mxu0 0.0
    %1946 = vmatpush2.msra.mxu0 0.0
    %1947 = vmatprep.subr.mxu0 0.0
    %1948 = vmatpush2.msra.mxu0 0.0
    %1949 = vmatprep.subr.mxu0 0.0
    %1950 = vmatpush2.msra.mxu0 0.0
    %1951 = vmatprep.subr.mxu0 0.0
    %1952 = vmatpush2.msra.mxu0 0.0
    %1953 = vmatprep.subr.mxu0 0.0
    %1954 = vmatpush2.msra.mxu0 0.0
    %1955 = vmatprep.subr.mxu0 0.0
    %1956 = vmatpush2.msra.mxu0 0.0
    %1957 = vmatprep.subr.mxu0 0.0
    %1958 = vmatpush2.msra.mxu0 0.0
    %1959 = vmatprep.subr.mxu0 0.0
    %1960 = vmatpush2.msra.mxu0 0.0
    %1961 = vmatprep.subr.mxu0 0.0
    %1962 = vmatpush2.msra.mxu0 0.0
    %1963 = vmatprep.subr.mxu0 0.0
    %1964 = vmatpush2.msra.mxu0 0.0
    %1965 = vmatprep.subr.mxu0 0.0
    %1966 = vmatpush2.msra.mxu0 0.0
    %1967 = vmatprep.mubr.f32.mxu0 0.0
    %1968 = vmatmul.mubr.f32.gmra.mxu0 %v1878
    %v1969 = vpop.f32.mrf.mxu0
    %v1970 = vadd.f32 %v1901, %v1969
    %v1971 = vpop.f32.mrf.mxu0
    %1972 = vmatprep.mubr.f32.mxu0 0.0
    %1973 = vmatmul.mubr.f32.gmra.mxu0 %v1879
    %v1974 = vpop.f32.mrf.mxu0
    %v1975 = vadd.f32 %v1901, %v1974
    %v1976 = vpop.f32.mrf.mxu0
    %1977 = vdwg.mxu0
    %v1978 = vadd.f32 %v1784, %v1970
    %v1979 = vadd.f32 %v1785, %v1975
    %v1980 = vld [vmem:[%s12] sm:$0x1]
    %v1981 = vld [vmem:[%s13] sm:$0x1]
    %v1982 = vsel %vm228, %v1978, 0.0
    %1983 = vadd.xlane.f32.xlu0 %v1982
    %v1984 = vpop.xlane.xlu0 %1983
    %v1985 = vsel %vm228, %v1979, 0.0
    %1986 = vadd.xlane.f32.xlu0 %v1985
    %v1987 = vpop.xlane.xlu0 %1986
    %v1988 = vmul.f32 %v1984, %v1749
    %v1989 = vmul.f32 %v1987, %v1749
    %v1990 = vsub.f32 %v1978, %v1988
    %v1991 = vsub.f32 %v1979, %v1989
    %v1992 = vmul.f32 %v1990, %v1990
    %v1993 = vmul.f32 %v1991, %v1991
    %v1994 = vsel %vm228, %v1992, 0.0
    %1995 = vadd.xlane.f32.xlu0 %v1994
    %v1996 = vpop.xlane.xlu0 %1995
    %v1997 = vsel %vm228, %v1993, 0.0
    %1998 = vadd.xlane.f32.xlu0 %v1997
    %v1999 = vpop.xlane.xlu0 %1998
    %v2000 = vmul.f32 %v1996, %v1749
    %v2001 = vmul.f32 %v1999, %v1749
    %v2002 = vadd.f32 %v2000, 1e-05
    %v2003 = vadd.f32 %v2001, 1e-05
    %v2004 = vrsqrt.pop %v2002
    %v2005 = vrsqrt.pop %v2003
    %v2006 = vmul.f32 %v1990, %v2004
    %v2007 = vmul.f32 %v1991, %v2005
    %v2009 = vlaneseq
    %v2010 = vshrl.u32 %v2009, 7
    %v2011 = vsub.s32 0, %v2010
    %v2012 = vrot.slane %v1980, %v2011
    %v2014 = vmul.f32 %v2006, %v2012
    %v2015 = vmul.f32 %v2007, %v2012
    %v2017 = vlaneseq
    %v2018 = vshrl.u32 %v2017, 7
    %v2019 = vsub.s32 0, %v2018
    %v2020 = vrot.slane %v1981, %v2019
    %v2022 = vadd.f32 %v2014, %v2020
    %v2023 = vadd.f32 %v2015, %v2020
    %2024 = vst.msk [vmem:[#allocation2] sm:$0xff] %vm228, %v2022
    %2025 = vst.msk [vmem:[#allocation2 + $0x8] sm:$0xff] %vm228, %v2023
    // Predicated region
    $region58: #{transformer_block.1} parent=1 // pred_check
      _
    $region59: #{transformer_block.1} parent=1 // pred_check_branch
      %2027 = sbr.rel (0) target = $region61
    $region60: #{transformer_block.1} parent=1 // pred_region
      %s2029 = ssub.s32 256, 256
      %2030 = vsyncadd [#allocation3], %s2029
      %s2031 = sshll.u32 [#allocation2], 4
      %s2032 = int_to_ptr.vmem [resolvable:$true] %s2031
      %2037 = dma.vmem_to_hbm [thread:$0]  %s2032, 256, %s14, [#allocation3], 128, 128, 8
    $region61: #{transformer_block.1} parent=1 // pred_fallthru
      _
    // Predicated region
    $region62: #{transformer_block.1} parent=1 // pred_check
      _
    $region63: #{transformer_block.1} parent=1 // pred_check_branch
      %2039 = sbr.rel (0) target = $region65
    $region64: #{transformer_block.1} parent=1 // pred_region
      %2040 = dma.done [#allocation3], 256
    $region65: #{transformer_block.1} parent=1 // pred_fallthru
      _
    %2041 = vsyncpa [#allocation3], 1

</llo_original>
